<compile_context>
chip_gen: v6e
topology: v6e:2x2x1
jax: 0.10.0
libtpu: 0.0.40
codegen_flags: <defaults>
</compile_context>

<pallas_src>
import functools

import jax
import jax.numpy as jnp
import numpy as np
from jax.experimental import pallas as pl
from jax.experimental.pallas import tpu as pltpu


def ema_kernel(x_ref, pool_ref, expand_ref, mask_ref, w1_ref, conv_ref,
               p_ref, pt_ref, cols_ref, out_ref, *, h, w, cg, mxu_dtype):
    """One grid step = b_tile group-samples, flattened to (R, hw) rows.

    x_ref      (R, hw)        R = b_tile*cg rows (sample-major, channel-minor)
    pool_ref   (hw, h+w)      mean-over-w | mean-over-h pooling matrix (mxu dtype)
    expand_ref (h+w, 2*hw)    block-structured broadcast-back matrix (mxu dtype)
    mask_ref   (9, hw)        zero-padding validity mask per 3x3 tap (f32)
    w1_ref     (R, R)         blockdiag(W1) for the 1x1 conv (mxu dtype)
    conv_ref   (R, 9R)        [blockdiag(W3[..,ky,kx]) for the 9 taps] (mxu dtype)
    p_ref      (R, b_tile)    P  = kron(I_b, ones(cg,1))  (f32)
    pt_ref     (b_tile, R)    P^T                          (f32)
    cols_ref   (R, 4)         [b1 | b3 | gn_gamma | gn_beta] tiled over samples
    out_ref    (R, hw)
    """
    eps = 1e-5
    hw = h * w

    def mdot(a, b):      # MXU matmul in the (usually bf16) operand dtype
        return jnp.dot(a.astype(mxu_dtype), b.astype(mxu_dtype),
                       preferred_element_type=jnp.float32)

    def fdot(a, b):      # small / precision-sensitive matmuls stay f32
        return jnp.dot(a, b, preferred_element_type=jnp.float32)

    xf = x_ref[...].astype(jnp.float32)                      # (R, hw)
    masks = mask_ref[...].astype(jnp.float32)                # (9, hw)

    cols = cols_ref[...].astype(jnp.float32)                 # (R, 4)
    b1, b3 = cols[:, 0:1], cols[:, 1:2]
    gamma, beta = cols[:, 2:3], cols[:, 3:4]
    pmat = p_ref[...].astype(jnp.float32)                    # (R, b_tile)
    ptmat = pt_ref[...].astype(jnp.float32)                  # (b_tile, R)

    # --- directional pools + 1x1 conv + sigmoid gates (single merged expand) --
    pooled = mdot(xf, pool_ref[...])                         # (R, h+w)
    gate_logits = mdot(w1_ref[...], pooled) + b1             # (R, h+w)
    sig = jax.nn.sigmoid(gate_logits)
    both = mdot(sig, expand_ref[...])                        # (R, 2*hw)
    gated = xf * both[:, :hw] * both[:, hw:]                 # (R, hw)

    # --- GroupNorm(cg groups, cg channels) == per-row norm over hw -----------
    # Row reductions as ones-column MXU matmuls (keeps the XLU free for rolls).
    redcol = jnp.full((hw, 1), 1.0 / hw, jnp.float32)
    mu = fdot(gated, redcol)                                 # (R, 1)
    ex2 = fdot(gated * gated, redcol)                        # (R, 1)
    var = ex2 - mu * mu
    x1 = (gated - mu) * jax.lax.rsqrt(var + eps) * gamma + beta

    # --- 3x3 conv, padding=1: 9 masked lane shifts + ONE fused (R,9R) dot ----
    slabs = []
    tap = 0
    for dy in (-1, 0, 1):
        for dx in (-1, 0, 1):
            s = dy * w + dx
            # rolled[p] == xf[p + s]  (wrap-around killed by the validity mask)
            rolled = xf if s == 0 else pltpu.roll(xf, (-s) % hw, 1)
            slabs.append(rolled * masks[tap:tap + 1, :])
            tap += 1
    stacked = jnp.concatenate(slabs, axis=0)                 # (9R, hw) f32
    x2 = mdot(conv_ref[...], stacked) + b3                   # (R, hw)

    # --- per-sample channel softmax of spatial means (mean-stabilized) -------
    m1 = fdot(x1, redcol)                                    # (R, 1)
    m2 = fdot(x2, redcol)                                    # (R, 1)
    m_cat = jnp.concatenate([m1, m2], axis=1)                # (R, 2)
    samp_mean = fdot(pmat, fdot(ptmat, m_cat)) * (1.0 / cg)  # per-sample mean
    e = jnp.exp(m_cat - samp_mean)                           # max term >= 1
    denom = fdot(pmat, fdot(ptmat, e))                       # (R, 2)
    a1 = e[:, 0:1] / denom[:, 0:1]
    a2 = e[:, 1:2] / denom[:, 1:2]

    # --- channel contraction + sigmoid gate via factored group-sum -----------
    mixed = a1 * x2 + a2 * x1                                # (R, hw)
    w_small = mdot(ptmat, mixed)                             # (b_tile, hw)
    gate = fdot(pmat, jax.nn.sigmoid(w_small))               # (R, hw), exact replicate
    out_ref[...] = (xf * gate).astype(out_ref.dtype)


def _mxu_row_cap():
    """Rows of one MXU tile: 128 on v2-v5, 256 on v6e/v7x."""
    try:
        kind = jax.devices()[0].device_kind.lower()
    except Exception:
        return 256
    return 128 if any(t in kind for t in ("v2", "v3", "v4", "v5")) else 256


def _pick_b_tile(bg, cg, h, w, x_itemsize, *, row_cap=256, mxu_itemsize=2,
                 vmem_budget=20 << 20):
    """Samples per grid step.  Preference order:
       1. R = b_tile*cg multiple of 8 sublanes (or the full array).
       2. R <= one MXU tile and honest per-step VMEM footprint within budget.
       3. Even number of grid steps (v7x megacore balance), else >= 2 steps.
       4. Largest surviving b_tile (amortizes the ~0.35us/step overhead)."""
    hw = h * w

    def step_bytes(d):
        r = d * cg
        return (4 * r * hw * x_itemsize            # x + out blocks, double-buffered
                + 9 * r * hw * 4                   # f32 stacked tap slab (fused conv)
                + 8 * r * hw * 4                   # live f32 (R,hw) temporaries
                + 2 * (hw * (h + w) + (h + w) * 2 * hw + 10 * r * r) * mxu_itemsize
                + 2 * (9 * hw + 2 * r * d + 4 * r) * 4)   # masks, P, P^T, cols

    divisors = [d for d in range(1, bg + 1) if bg % d == 0]
    legal = [d for d in divisors if (d * cg) % 8 == 0 or d == bg] or [bg]
    fit = [d for d in legal if d * cg <= row_cap and step_bytes(d) <= vmem_budget]
    if not fit:
        fit = [d for d in legal if step_bytes(d) <= vmem_budget] or [min(legal)]
    even = [d for d in fit if (bg // d) % 2 == 0]
    multi = [d for d in fit if bg // d >= 2]
    return max(even or multi or fit)


def _ema_constants(h, w, cg, b_tile, w1, b1, w3, b3, gamma, beta, mxu_dtype):
    """Host-side packing of all kernel constants."""
    hw = h * w
    R = b_tile * cg
    yy = np.arange(hw) // w
    xx = np.arange(hw) % w

    pool = np.zeros((hw, h + w), np.float32)
    pool[np.arange(hw), yy] = 1.0 / w            # mean over w -> columns [0, h)
    pool[np.arange(hw), h + xx] = 1.0 / h        # mean over h -> columns [h, h+w)

    expand2 = np.zeros((h + w, 2 * hw), np.float32)
    expand2[yy, np.arange(hw)] = 1.0             # h-gate -> first hw lanes
    expand2[h + xx, hw + np.arange(hw)] = 1.0    # w-gate -> second hw lanes

    masks = np.zeros((9, hw), np.float32)
    tap = 0
    for dy in (-1, 0, 1):
        for dx in (-1, 0, 1):
            valid = ((yy + dy >= 0) & (yy + dy < h) &
                     (xx + dx >= 0) & (xx + dx < w))
            masks[tap] = valid.astype(np.float32)
            tap += 1

    eye_b = np.eye(b_tile, dtype=np.float32)
    w1_np = np.asarray(w1, np.float32).reshape(cg, cg)
    w3_np = np.asarray(w3, np.float32).reshape(cg, cg, 3, 3)
    w1bd = np.kron(eye_b, w1_np)                                   # (R, R)
    conv_all = np.zeros((R, 9 * R), np.float32)                    # fused taps
    tap = 0
    for ky in range(3):
        for kx in range(3):
            conv_all[:, tap * R:(tap + 1) * R] = np.kron(eye_b, w3_np[:, :, ky, kx])
            tap += 1

    pmat = np.kron(eye_b, np.ones((cg, 1), np.float32))            # (R, b_tile)
    pmatT = np.ascontiguousarray(pmat.T)                           # (b_tile, R)

    cols = np.stack([np.tile(np.asarray(v, np.float32).reshape(cg), b_tile)
                     for v in (b1, b3, gamma, beta)], axis=1)      # (R, 4)

    md = mxu_dtype
    return (jnp.asarray(pool, md), jnp.asarray(expand2, md),
            jnp.asarray(masks, jnp.float32),
            jnp.asarray(w1bd, md), jnp.asarray(conv_all, md),
            jnp.asarray(pmat, jnp.float32), jnp.asarray(pmatT, jnp.float32),
            jnp.asarray(cols, jnp.float32))


def ema_forward(x, params, groups, *, b_tile=None, mxu_dtype=jnp.bfloat16,
                donate_input=False):
    b, c, h, w = x.shape
    assert c % groups == 0, "channels must be divisible by groups"
    cg = c // groups
    bg = b * groups
    hw = h * w

    if b_tile is None:
        b_tile = _pick_b_tile(bg, cg, h, w, jnp.dtype(x.dtype).itemsize,
                              row_cap=_mxu_row_cap(),
                              mxu_itemsize=jnp.dtype(mxu_dtype).itemsize)
    assert bg % b_tile == 0, "b_tile must divide b*groups"
    R = b_tile * cg
    assert (R % 8 == 0) or (b_tile == bg), (
        "row tile must be a multiple of 8 sublanes or cover the full array")
    # NOTE: for best store-side perf hw should be >=128 (ideally a multiple of
    # 128); smaller feature maps still run correctly (block covers full lanes).

    pool, expand2, masks, w1bd, conv_all, pmat, pmatT, cols = _ema_constants(
        h, w, cg, b_tile,
        params["conv1x1_w"], params["conv1x1_b"],
        params["conv3x3_w"], params["conv3x3_b"],
        params["gn_w"], params["gn_b"], mxu_dtype)

    # Lane-dense 2-D slab: rows = (sample, channel), lanes = h*w (free reshape).
    x2d = x.reshape(bg * cg, hw)
    n_steps = bg // b_tile

    kernel = functools.partial(ema_kernel, h=h, w=w, cg=cg, mxu_dtype=mxu_dtype)

    out2d = pl.pallas_call(
        kernel,
        out_shape=jax.ShapeDtypeStruct((bg * cg, hw), x.dtype),
        grid_spec=pltpu.PrefetchScalarGridSpec(
            num_scalar_prefetch=0,
            grid=(n_steps,),
            in_specs=[
                pl.BlockSpec((R, hw), lambda i: (i, 0)),            # x slab
                pl.BlockSpec((hw, h + w), lambda i: (0, 0)),        # pool matrix
                pl.BlockSpec((h + w, 2 * hw), lambda i: (0, 0)),    # merged expand
                pl.BlockSpec((9, hw), lambda i: (0, 0)),            # conv3x3 masks
                pl.BlockSpec((R, R), lambda i: (0, 0)),             # blockdiag(W1)
                pl.BlockSpec((R, 9 * R), lambda i: (0, 0)),         # fused 3x3 taps
                pl.BlockSpec((R, b_tile), lambda i: (0, 0)),        # P
                pl.BlockSpec((b_tile, R), lambda i: (0, 0)),        # P^T
                pl.BlockSpec((R, 4), lambda i: (0, 0)),             # packed columns
            ],
            out_specs=pl.BlockSpec((R, hw), lambda i: (i, 0)),
        ),
        compiler_params=pltpu.CompilerParams(
            dimension_semantics=("parallel",)),
        input_output_aliases=({0: 0} if donate_input else {}),
    )(x2d, pool, expand2, masks, w1bd, conv_all, pmat, pmatT, cols)

    return out2d.reshape(b, c, h, w)


def ema_reference(x, params, groups):
    """Pure-JAX reference mirroring the PyTorch forward exactly."""
    b, c, h, w = x.shape
    cg = c // groups
    bg = b * groups
    gx = x.reshape(bg, cg, h, w)

    x_h = jnp.mean(gx, axis=3, keepdims=True)                       # (bg,cg,h,1)
    x_w = jnp.transpose(jnp.mean(gx, axis=2, keepdims=True), (0, 1, 3, 2))
    cat = jnp.concatenate([x_h, x_w], axis=2)                       # (bg,cg,h+w,1)
    w1 = params["conv1x1_w"].reshape(cg, cg)
    hw_ = (jnp.einsum("oc,bcpq->bopq", w1, cat)
           + params["conv1x1_b"].reshape(1, cg, 1, 1))
    xh, xw = hw_[:, :, :h], hw_[:, :, h:]
    xw = jnp.transpose(xw, (0, 1, 3, 2))
    s = gx * jax.nn.sigmoid(xh) * jax.nn.sigmoid(xw)

    mu = jnp.mean(s, axis=(2, 3), keepdims=True)
    var = jnp.mean((s - mu) ** 2, axis=(2, 3), keepdims=True)
    x1 = (s - mu) / jnp.sqrt(var + 1e-5)
    x1 = x1 * params["gn_w"].reshape(1, cg, 1, 1) + params["gn_b"].reshape(1, cg, 1, 1)

    x2 = jax.lax.conv_general_dilated(
        gx, params["conv3x3_w"], (1, 1), "SAME",
        dimension_numbers=("NCHW", "OIHW", "NCHW"))
    x2 = x2 + params["conv3x3_b"].reshape(1, cg, 1, 1)

    x11 = jax.nn.softmax(jnp.mean(x1, axis=(2, 3)).reshape(bg, 1, cg), axis=-1)
    x12 = x2.reshape(bg, cg, h * w)
    x21 = jax.nn.softmax(jnp.mean(x2, axis=(2, 3)).reshape(bg, 1, cg), axis=-1)
    x22 = x1.reshape(bg, cg, h * w)
    weights = (jnp.matmul(x11, x12) + jnp.matmul(x21, x22)).reshape(bg, 1, h, w)
    return (gx * jax.nn.sigmoid(weights)).reshape(b, c, h, w)


if __name__ == "__main__":
    key = jax.random.PRNGKey(0)
    b, c, h, w = 2, 32, 16, 16
    groups = 8                      # "factor" in the PyTorch module
    cg = c // groups

    ks = jax.random.split(key, 7)
    x = jax.random.normal(ks[0], (b, c, h, w), jnp.float32)
    params = {
        "conv1x1_w": 0.3 * jax.random.normal(ks[1], (cg, cg, 1, 1), jnp.float32),
        "conv1x1_b": 0.1 * jax.random.normal(ks[2], (cg,), jnp.float32),
        "conv3x3_w": 0.2 * jax.random.normal(ks[3], (cg, cg, 3, 3), jnp.float32),
        "conv3x3_b": 0.1 * jax.random.normal(ks[4], (cg,), jnp.float32),
        "gn_w": 1.0 + 0.1 * jax.random.normal(ks[5], (cg,), jnp.float32),
        "gn_b": 0.1 * jax.random.normal(ks[6], (cg,), jnp.float32),
    }

    ref = jax.block_until_ready(ema_reference(x, params, groups))

    # 1) f32 MXU operands: tight algorithmic-equivalence check.
    out_f32 = jax.block_until_ready(
        ema_forward(x, params, groups, mxu_dtype=jnp.float32))
    assert out_f32.shape == (b, c, h, w)
    if not np.allclose(np.asarray(out_f32), np.asarray(ref), rtol=2e-3, atol=2e-3):
        err = float(jnp.max(jnp.abs(out_f32 - ref)))
        raise AssertionError(f"f32-MXU kernel mismatch vs reference, max abs err {err}")

    # 2) Default bf16 MXU operands (f32 accumulate): production fast path.
    out = jax.block_until_ready(ema_forward(x, params, groups))
    assert out.shape == (b, c, h, w)
    if not np.allclose(np.asarray(out), np.asarray(ref), rtol=2.5e-2, atol=2.5e-2):
        err = float(jnp.max(jnp.abs(out - ref)))
        raise AssertionError(f"bf16-MXU kernel mismatch vs reference, max abs err {err}")

    print("KERNEL_OK")
</pallas_src>

<mosaic_0001>
module attributes {stable_mosaic.version = 11 : i64} {
  func.func @ema_kernel(%arg0: i32, %arg1: memref<32x256xf32, #tpu.memory_space<vmem>>, %arg2: memref<256x32xf32, #tpu.memory_space<vmem>>, %arg3: memref<32x512xf32, #tpu.memory_space<vmem>>, %arg4: memref<9x256xf32, #tpu.memory_space<vmem>>, %arg5: memref<32x32xf32, #tpu.memory_space<vmem>>, %arg6: memref<32x288xf32, #tpu.memory_space<vmem>>, %arg7: memref<32x8xf32, #tpu.memory_space<vmem>>, %arg8: memref<8x32xf32, #tpu.memory_space<vmem>>, %arg9: memref<32x4xf32, #tpu.memory_space<vmem>>, %arg10: memref<32x256xf32, #tpu.memory_space<vmem>>) attributes {dimension_semantics = [#tpu.dimension_semantics<parallel>], iteration_bounds = array<i64: 2>, scalar_prefetch = 0 : i64, scratch_operands = 0 : i64, tpu.core_type = #tpu.core_type<tc>, window_params = [{transform_indices = @transform_0, window_bounds = array<i64: 32, 256>}, {pipeline_mode = #tpu.pipeline_mode<synchronous>, transform_indices = @transform_1, window_bounds = array<i64: 256, 32>}, {pipeline_mode = #tpu.pipeline_mode<synchronous>, transform_indices = @transform_2, window_bounds = array<i64: 32, 512>}, {pipeline_mode = #tpu.pipeline_mode<synchronous>, transform_indices = @transform_3, window_bounds = array<i64: 9, 256>}, {pipeline_mode = #tpu.pipeline_mode<synchronous>, transform_indices = @transform_4, window_bounds = array<i64: 32, 32>}, {pipeline_mode = #tpu.pipeline_mode<synchronous>, transform_indices = @transform_5, window_bounds = array<i64: 32, 288>}, {pipeline_mode = #tpu.pipeline_mode<synchronous>, transform_indices = @transform_6, window_bounds = array<i64: 32, 8>}, {pipeline_mode = #tpu.pipeline_mode<synchronous>, transform_indices = @transform_7, window_bounds = array<i64: 8, 32>}, {pipeline_mode = #tpu.pipeline_mode<synchronous>, transform_indices = @transform_8, window_bounds = array<i64: 32, 4>}, {transform_indices = @transform_9, window_bounds = array<i64: 32, 256>}]} {
    %c0 = arith.constant 0 : index
    %c0_0 = arith.constant 0 : index
    %0 = vector.load %arg1[%c0, %c0_0] : memref<32x256xf32, #tpu.memory_space<vmem>>, vector<32x256xf32>
    %c0_1 = arith.constant 0 : index
    %c0_2 = arith.constant 0 : index
    %1 = vector.load %arg4[%c0_1, %c0_2] : memref<9x256xf32, #tpu.memory_space<vmem>>, vector<9x256xf32>
    %c0_3 = arith.constant 0 : index
    %c0_4 = arith.constant 0 : index
    %2 = vector.load %arg9[%c0_3, %c0_4] : memref<32x4xf32, #tpu.memory_space<vmem>>, vector<32x4xf32>
    %3 = vector.extract_strided_slice %2 {offsets = [0, 0], sizes = [32, 1], strides = [1, 1]} : vector<32x4xf32> to vector<32x1xf32>
    %4 = vector.extract_strided_slice %2 {offsets = [0, 1], sizes = [32, 1], strides = [1, 1]} : vector<32x4xf32> to vector<32x1xf32>
    %5 = vector.extract_strided_slice %2 {offsets = [0, 2], sizes = [32, 1], strides = [1, 1]} : vector<32x4xf32> to vector<32x1xf32>
    %6 = vector.extract_strided_slice %2 {offsets = [0, 3], sizes = [32, 1], strides = [1, 1]} : vector<32x4xf32> to vector<32x1xf32>
    %c0_5 = arith.constant 0 : index
    %c0_6 = arith.constant 0 : index
    %7 = vector.load %arg7[%c0_5, %c0_6] : memref<32x8xf32, #tpu.memory_space<vmem>>, vector<32x8xf32>
    %c0_7 = arith.constant 0 : index
    %c0_8 = arith.constant 0 : index
    %8 = vector.load %arg8[%c0_7, %c0_8] : memref<8x32xf32, #tpu.memory_space<vmem>>, vector<8x32xf32>
    %c0_9 = arith.constant 0 : index
    %c0_10 = arith.constant 0 : index
    %9 = vector.load %arg2[%c0_9, %c0_10] : memref<256x32xf32, #tpu.memory_space<vmem>>, vector<256x32xf32>
    %cst = arith.constant dense<0.000000e+00> : vector<32x32xf32>
    %10 = tpu.matmul %0, %9, %cst {dimension_numbers = #tpu.dot_dimension_numbers<[1], [0], [0], [1], [0, 0, 1, 1], [], []>} : vector<32x256xf32>, vector<256x32xf32>, vector<32x32xf32> -> vector<32x32xf32>
    %c0_11 = arith.constant 0 : index
    %c0_12 = arith.constant 0 : index
    %11 = vector.load %arg5[%c0_11, %c0_12] : memref<32x32xf32, #tpu.memory_space<vmem>>, vector<32x32xf32>
    %cst_13 = arith.constant dense<0.000000e+00> : vector<32x32xf32>
    %12 = tpu.matmul %11, %10, %cst_13 {dimension_numbers = #tpu.dot_dimension_numbers<[1], [0], [0], [1], [0, 0, 1, 1], [], []>} : vector<32x32xf32>, vector<32x32xf32>, vector<32x32xf32> -> vector<32x32xf32>
    %13 = vector.broadcast %3 : vector<32x1xf32> to vector<32x32xf32>
    %14 = arith.addf %12, %13 : vector<32x32xf32>
    %15 = arith.negf %14 : vector<32x32xf32>
    %16 = math.exp %15 : vector<32x32xf32>
    %cst_14 = arith.constant 1.000000e+00 : f32
    %17 = vector.broadcast %cst_14 : f32 to vector<32x32xf32>
    %18 = arith.addf %17, %16 : vector<32x32xf32>
    %19 = arith.divf %17, %18 : vector<32x32xf32>
    %c0_15 = arith.constant 0 : index
    %c0_16 = arith.constant 0 : index
    %20 = vector.load %arg3[%c0_15, %c0_16] : memref<32x512xf32, #tpu.memory_space<vmem>>, vector<32x512xf32>
    %cst_17 = arith.constant dense<0.000000e+00> : vector<32x512xf32>
    %21 = tpu.matmul %19, %20, %cst_17 {dimension_numbers = #tpu.dot_dimension_numbers<[1], [0], [0], [1], [0, 0, 1, 1], [], []>} : vector<32x32xf32>, vector<32x512xf32>, vector<32x512xf32> -> vector<32x512xf32>
    %22 = vector.extract_strided_slice %21 {offsets = [0, 0], sizes = [32, 256], strides = [1, 1]} : vector<32x512xf32> to vector<32x256xf32>
    %23 = arith.mulf %0, %22 : vector<32x256xf32>
    %24 = vector.extract_strided_slice %21 {offsets = [0, 256], sizes = [32, 256], strides = [1, 1]} : vector<32x512xf32> to vector<32x256xf32>
    %25 = arith.mulf %23, %24 : vector<32x256xf32>
    %cst_18 = arith.constant 3.906250e-03 : f32
    %26 = vector.broadcast %cst_18 : f32 to vector<256x1xf32>
    %cst_19 = arith.constant dense<0.000000e+00> : vector<32x1xf32>
    %27 = tpu.matmul %25, %26, %cst_19 {dimension_numbers = #tpu.dot_dimension_numbers<[1], [0], [0], [1], [0, 0, 1, 1], [], []>} : vector<32x256xf32>, vector<256x1xf32>, vector<32x1xf32> -> vector<32x1xf32>
    %28 = arith.mulf %25, %25 : vector<32x256xf32>
    %cst_20 = arith.constant dense<0.000000e+00> : vector<32x1xf32>
    %29 = tpu.matmul %28, %26, %cst_20 {dimension_numbers = #tpu.dot_dimension_numbers<[1], [0], [0], [1], [0, 0, 1, 1], [], []>} : vector<32x256xf32>, vector<256x1xf32>, vector<32x1xf32> -> vector<32x1xf32>
    %30 = arith.mulf %27, %27 : vector<32x1xf32>
    %31 = arith.subf %29, %30 : vector<32x1xf32>
    %32 = vector.broadcast %27 : vector<32x1xf32> to vector<32x256xf32>
    %33 = arith.subf %25, %32 : vector<32x256xf32>
    %cst_21 = arith.constant 9.99999974E-6 : f32
    %34 = vector.broadcast %cst_21 : f32 to vector<32x1xf32>
    %35 = arith.addf %31, %34 : vector<32x1xf32>
    %36 = math.rsqrt %35 : vector<32x1xf32>
    %37 = vector.broadcast %36 : vector<32x1xf32> to vector<32x256xf32>
    %38 = arith.mulf %33, %37 : vector<32x256xf32>
    %39 = vector.broadcast %5 : vector<32x1xf32> to vector<32x256xf32>
    %40 = arith.mulf %38, %39 : vector<32x256xf32>
    %41 = vector.broadcast %6 : vector<32x1xf32> to vector<32x256xf32>
    %42 = arith.addf %40, %41 : vector<32x256xf32>
    %c17_i32 = arith.constant 17 : i32
    %43 = tpu.dynamic_rotate %0 by %c17_i32 dim 1 : vector<32x256xf32>, i32 -> vector<32x256xf32>
    %44 = vector.extract_strided_slice %1 {offsets = [0, 0], sizes = [1, 256], strides = [1, 1]} : vector<9x256xf32> to vector<1x256xf32>
    %45 = vector.broadcast %44 : vector<1x256xf32> to vector<32x256xf32>
    %46 = arith.mulf %43, %45 : vector<32x256xf32>
    %c16_i32 = arith.constant 16 : i32
    %47 = tpu.dynamic_rotate %0 by %c16_i32 dim 1 : vector<32x256xf32>, i32 -> vector<32x256xf32>
    %48 = vector.extract_strided_slice %1 {offsets = [1, 0], sizes = [1, 256], strides = [1, 1]} : vector<9x256xf32> to vector<1x256xf32>
    %49 = vector.broadcast %48 : vector<1x256xf32> to vector<32x256xf32>
    %50 = arith.mulf %47, %49 : vector<32x256xf32>
    %c15_i32 = arith.constant 15 : i32
    %51 = tpu.dynamic_rotate %0 by %c15_i32 dim 1 : vector<32x256xf32>, i32 -> vector<32x256xf32>
    %52 = vector.extract_strided_slice %1 {offsets = [2, 0], sizes = [1, 256], strides = [1, 1]} : vector<9x256xf32> to vector<1x256xf32>
    %53 = vector.broadcast %52 : vector<1x256xf32> to vector<32x256xf32>
    %54 = arith.mulf %51, %53 : vector<32x256xf32>
    %c1_i32 = arith.constant 1 : i32
    %55 = tpu.dynamic_rotate %0 by %c1_i32 dim 1 : vector<32x256xf32>, i32 -> vector<32x256xf32>
    %56 = vector.extract_strided_slice %1 {offsets = [3, 0], sizes = [1, 256], strides = [1, 1]} : vector<9x256xf32> to vector<1x256xf32>
    %57 = vector.broadcast %56 : vector<1x256xf32> to vector<32x256xf32>
    %58 = arith.mulf %55, %57 : vector<32x256xf32>
    %59 = vector.extract_strided_slice %1 {offsets = [4, 0], sizes = [1, 256], strides = [1, 1]} : vector<9x256xf32> to vector<1x256xf32>
    %60 = vector.broadcast %59 : vector<1x256xf32> to vector<32x256xf32>
    %61 = arith.mulf %0, %60 : vector<32x256xf32>
    %c255_i32 = arith.constant 255 : i32
    %62 = tpu.dynamic_rotate %0 by %c255_i32 dim 1 : vector<32x256xf32>, i32 -> vector<32x256xf32>
    %63 = vector.extract_strided_slice %1 {offsets = [5, 0], sizes = [1, 256], strides = [1, 1]} : vector<9x256xf32> to vector<1x256xf32>
    %64 = vector.broadcast %63 : vector<1x256xf32> to vector<32x256xf32>
    %65 = arith.mulf %62, %64 : vector<32x256xf32>
    %c241_i32 = arith.constant 241 : i32
    %66 = tpu.dynamic_rotate %0 by %c241_i32 dim 1 : vector<32x256xf32>, i32 -> vector<32x256xf32>
    %67 = vector.extract_strided_slice %1 {offsets = [6, 0], sizes = [1, 256], strides = [1, 1]} : vector<9x256xf32> to vector<1x256xf32>
    %68 = vector.broadcast %67 : vector<1x256xf32> to vector<32x256xf32>
    %69 = arith.mulf %66, %68 : vector<32x256xf32>
    %c240_i32 = arith.constant 240 : i32
    %70 = tpu.dynamic_rotate %0 by %c240_i32 dim 1 : vector<32x256xf32>, i32 -> vector<32x256xf32>
    %71 = vector.extract_strided_slice %1 {offsets = [7, 0], sizes = [1, 256], strides = [1, 1]} : vector<9x256xf32> to vector<1x256xf32>
    %72 = vector.broadcast %71 : vector<1x256xf32> to vector<32x256xf32>
    %73 = arith.mulf %70, %72 : vector<32x256xf32>
    %c239_i32 = arith.constant 239 : i32
    %74 = tpu.dynamic_rotate %0 by %c239_i32 dim 1 : vector<32x256xf32>, i32 -> vector<32x256xf32>
    %75 = vector.extract_strided_slice %1 {offsets = [8, 0], sizes = [1, 256], strides = [1, 1]} : vector<9x256xf32> to vector<1x256xf32>
    %76 = vector.broadcast %75 : vector<1x256xf32> to vector<32x256xf32>
    %77 = arith.mulf %74, %76 : vector<32x256xf32>
    %78 = tpu.concatenate %46, %50, %54, %58, %61, %65, %69, %73, %77 in 0 : vector<32x256xf32>, vector<32x256xf32>, vector<32x256xf32>, vector<32x256xf32>, vector<32x256xf32>, vector<32x256xf32>, vector<32x256xf32>, vector<32x256xf32>, vector<32x256xf32> -> vector<288x256xf32>
    %c0_22 = arith.constant 0 : index
    %c0_23 = arith.constant 0 : index
    %79 = vector.load %arg6[%c0_22, %c0_23] : memref<32x288xf32, #tpu.memory_space<vmem>>, vector<32x288xf32>
    %cst_24 = arith.constant dense<0.000000e+00> : vector<32x256xf32>
    %80 = tpu.matmul %79, %78, %cst_24 {dimension_numbers = #tpu.dot_dimension_numbers<[1], [0], [0], [1], [0, 0, 1, 1], [], []>} : vector<32x288xf32>, vector<288x256xf32>, vector<32x256xf32> -> vector<32x256xf32>
    %81 = vector.broadcast %4 : vector<32x1xf32> to vector<32x256xf32>
    %82 = arith.addf %80, %81 : vector<32x256xf32>
    %cst_25 = arith.constant dense<0.000000e+00> : vector<32x1xf32>
    %83 = tpu.matmul %42, %26, %cst_25 {dimension_numbers = #tpu.dot_dimension_numbers<[1], [0], [0], [1], [0, 0, 1, 1], [], []>} : vector<32x256xf32>, vector<256x1xf32>, vector<32x1xf32> -> vector<32x1xf32>
    %cst_26 = arith.constant dense<0.000000e+00> : vector<32x1xf32>
    %84 = tpu.matmul %82, %26, %cst_26 {dimension_numbers = #tpu.dot_dimension_numbers<[1], [0], [0], [1], [0, 0, 1, 1], [], []>} : vector<32x256xf32>, vector<256x1xf32>, vector<32x1xf32> -> vector<32x1xf32>
    %85 = tpu.concatenate %83, %84 in 1 : vector<32x1xf32>, vector<32x1xf32> -> vector<32x2xf32>
    %cst_27 = arith.constant dense<0.000000e+00> : vector<8x2xf32>
    %86 = tpu.matmul %8, %85, %cst_27 {dimension_numbers = #tpu.dot_dimension_numbers<[1], [0], [0], [1], [0, 0, 1, 1], [], []>} : vector<8x32xf32>, vector<32x2xf32>, vector<8x2xf32> -> vector<8x2xf32>
    %cst_28 = arith.constant dense<0.000000e+00> : vector<32x2xf32>
    %87 = tpu.matmul %7, %86, %cst_28 {dimension_numbers = #tpu.dot_dimension_numbers<[1], [0], [0], [1], [0, 0, 1, 1], [], []>} : vector<32x8xf32>, vector<8x2xf32>, vector<32x2xf32> -> vector<32x2xf32>
    %cst_29 = arith.constant 2.500000e-01 : f32
    %88 = vector.broadcast %cst_29 : f32 to vector<32x2xf32>
    %89 = arith.mulf %87, %88 : vector<32x2xf32>
    %90 = arith.subf %85, %89 : vector<32x2xf32>
    %91 = math.exp %90 : vector<32x2xf32>
    %cst_30 = arith.constant dense<0.000000e+00> : vector<8x2xf32>
    %92 = tpu.matmul %8, %91, %cst_30 {dimension_numbers = #tpu.dot_dimension_numbers<[1], [0], [0], [1], [0, 0, 1, 1], [], []>} : vector<8x32xf32>, vector<32x2xf32>, vector<8x2xf32> -> vector<8x2xf32>
    %cst_31 = arith.constant dense<0.000000e+00> : vector<32x2xf32>
    %93 = tpu.matmul %7, %92, %cst_31 {dimension_numbers = #tpu.dot_dimension_numbers<[1], [0], [0], [1], [0, 0, 1, 1], [], []>} : vector<32x8xf32>, vector<8x2xf32>, vector<32x2xf32> -> vector<32x2xf32>
    %94 = vector.extract_strided_slice %91 {offsets = [0, 0], sizes = [32, 1], strides = [1, 1]} : vector<32x2xf32> to vector<32x1xf32>
    %95 = vector.extract_strided_slice %93 {offsets = [0, 0], sizes = [32, 1], strides = [1, 1]} : vector<32x2xf32> to vector<32x1xf32>
    %96 = arith.divf %94, %95 : vector<32x1xf32>
    %97 = vector.extract_strided_slice %91 {offsets = [0, 1], sizes = [32, 1], strides = [1, 1]} : vector<32x2xf32> to vector<32x1xf32>
    %98 = vector.extract_strided_slice %93 {offsets = [0, 1], sizes = [32, 1], strides = [1, 1]} : vector<32x2xf32> to vector<32x1xf32>
    %99 = arith.divf %97, %98 : vector<32x1xf32>
    %100 = vector.broadcast %96 : vector<32x1xf32> to vector<32x256xf32>
    %101 = arith.mulf %100, %82 : vector<32x256xf32>
    %102 = vector.broadcast %99 : vector<32x1xf32> to vector<32x256xf32>
    %103 = arith.mulf %102, %42 : vector<32x256xf32>
    %104 = arith.addf %101, %103 : vector<32x256xf32>
    %cst_32 = arith.constant dense<0.000000e+00> : vector<8x256xf32>
    %105 = tpu.matmul %8, %104, %cst_32 {dimension_numbers = #tpu.dot_dimension_numbers<[1], [0], [0], [1], [0, 0, 1, 1], [], []>} : vector<8x32xf32>, vector<32x256xf32>, vector<8x256xf32> -> vector<8x256xf32>
    %106 = arith.negf %105 : vector<8x256xf32>
    %107 = math.exp %106 : vector<8x256xf32>
    %cst_33 = arith.constant 1.000000e+00 : f32
    %108 = vector.broadcast %cst_33 : f32 to vector<8x256xf32>
    %109 = arith.addf %108, %107 : vector<8x256xf32>
    %110 = arith.divf %108, %109 : vector<8x256xf32>
    %cst_34 = arith.constant dense<0.000000e+00> : vector<32x256xf32>
    %111 = tpu.matmul %7, %110, %cst_34 {dimension_numbers = #tpu.dot_dimension_numbers<[1], [0], [0], [1], [0, 0, 1, 1], [], []>} : vector<32x8xf32>, vector<8x256xf32>, vector<32x256xf32> -> vector<32x256xf32>
    %112 = arith.mulf %0, %111 : vector<32x256xf32>
    %c0_35 = arith.constant 0 : index
    %c0_36 = arith.constant 0 : index
    %113 = vector.load %arg10[%c0_35, %c0_36] : memref<32x256xf32, #tpu.memory_space<vmem>>, vector<32x256xf32>
    tpu.vector_store %arg10[%c0_35, %c0_36], %112 {strides = array<i32>} : memref<32x256xf32, #tpu.memory_space<vmem>>, vector<32x256xf32>,
    return
  }
  func.func @transform_0(%arg0: i32) -> (i32, i32) {
    %c0_i32 = arith.constant 0 : i32
    %c0_i32_0 = arith.constant 0 : i32
    return %arg0, %c0_i32 : i32, i32
  }
  func.func @transform_1(%arg0: i32) -> (i32, i32) {
    %c0_i32 = arith.constant 0 : i32
    %c0_i32_0 = arith.constant 0 : i32
    %c0_i32_1 = arith.constant 0 : i32
    return %c0_i32, %c0_i32_0 : i32, i32
  }
  func.func @transform_2(%arg0: i32) -> (i32, i32) {
    %c0_i32 = arith.constant 0 : i32
    %c0_i32_0 = arith.constant 0 : i32
    %c0_i32_1 = arith.constant 0 : i32
    return %c0_i32, %c0_i32_0 : i32, i32
  }
  func.func @transform_3(%arg0: i32) -> (i32, i32) {
    %c0_i32 = arith.constant 0 : i32
    %c0_i32_0 = arith.constant 0 : i32
    %c0_i32_1 = arith.constant 0 : i32
    return %c0_i32, %c0_i32_0 : i32, i32
  }
  func.func @transform_4(%arg0: i32) -> (i32, i32) {
    %c0_i32 = arith.constant 0 : i32
    %c0_i32_0 = arith.constant 0 : i32
    %c0_i32_1 = arith.constant 0 : i32
    return %c0_i32, %c0_i32_0 : i32, i32
  }
  func.func @transform_5(%arg0: i32) -> (i32, i32) {
    %c0_i32 = arith.constant 0 : i32
    %c0_i32_0 = arith.constant 0 : i32
    %c0_i32_1 = arith.constant 0 : i32
    return %c0_i32, %c0_i32_0 : i32, i32
  }
  func.func @transform_6(%arg0: i32) -> (i32, i32) {
    %c0_i32 = arith.constant 0 : i32
    %c0_i32_0 = arith.constant 0 : i32
    %c0_i32_1 = arith.constant 0 : i32
    return %c0_i32, %c0_i32_0 : i32, i32
  }
  func.func @transform_7(%arg0: i32) -> (i32, i32) {
    %c0_i32 = arith.constant 0 : i32
    %c0_i32_0 = arith.constant 0 : i32
    %c0_i32_1 = arith.constant 0 : i32
    return %c0_i32, %c0_i32_0 : i32, i32
  }
  func.func @transform_8(%arg0: i32) -> (i32, i32) {
    %c0_i32 = arith.constant 0 : i32
    %c0_i32_0 = arith.constant 0 : i32
    %c0_i32_1 = arith.constant 0 : i32
    return %c0_i32, %c0_i32_0 : i32, i32
  }
  func.func @transform_9(%arg0: i32) -> (i32, i32) {
    %c0_i32 = arith.constant 0 : i32
    %c0_i32_0 = arith.constant 0 : i32
    return %arg0, %c0_i32 : i32, i32
  }
}

</mosaic_0001>

<llo_original>
// kernel: tpu_custom_call.1
$region0: #{tpu_custom_call.1}
  #allocation0 [shape = 'u32[]', space=smem, size = 0x4, offset = 0x4, fixed_abs, tag = 'smem constant byte address 0x4 - core index']
  #allocation1 [shape = 'u32[144,128]{1,0:T(1,128)}', space=vmem, size = 0x12000, scoped, tag = 'internal scratch']
  %s0 = inlined_call_operand.vmem [shape: f32[64,256], index: 0, kind: input, shape index: {}]
  %s1 = inlined_call_operand.vmem [shape: f32[256,32], index: 1, kind: input, shape index: {}]
  %s2 = inlined_call_operand.vmem [shape: f32[32,512], index: 2, kind: input, shape index: {}]
  %s3 = inlined_call_operand.vmem [shape: f32[9,256], index: 3, kind: input, shape index: {}]
  %s4 = inlined_call_operand.hbm [shape: f32[32,32], index: 4, kind: input, shape index: {}]
  %s5 = inlined_call_operand.vmem [shape: f32[32,288], index: 5, kind: input, shape index: {}]
  %s6 = inlined_call_operand.vmem [shape: f32[32,8], index: 6, kind: input, shape index: {}]
  %s7 = inlined_call_operand.vmem [shape: f32[8,32], index: 7, kind: input, shape index: {}]
  %s8 = inlined_call_operand.vmem [shape: f32[32,4], index: 8, kind: input, shape index: {}]
  %s9 = inlined_call_operand.hbm [shape: f32[64,256], index: 9, kind: output, shape index: {}]
  %s10 = sld [smem:[#allocation0]]
  $region73: #{tpu_custom_call.1} parent=0
    _
  %s12 = ssub.s32 1, %s10
  %s13 = scalar_select 0, %s12, %s10
  $region1: #{tpu_custom_call.1} parent=0
    #allocation2 [shape = 'u8[16384]{0}', space=vmem, size = 0x4000, scoped, tag = 'input window, operand 4, single buffered']
    #allocation3 [shape = 's32[2]{0}', space=sflag, size = 0x8, scoped, tag = 'scoped memory for tpu_custom_call.1']
    #allocation4 [shape = 's32[2]{0}', space=sflag, size = 0x8, scoped, tag = 'scoped memory for tpu_custom_call.1']
    #allocation5 [shape = 'u8[65536]{0}', space=vmem, size = 0x10000, scoped, tag = 'output window, operand 0']
    %14 = vsyncpa [#allocation3], 0
    %15 = vsyncpa [#allocation4], 0
    %s16 = scalar_lea.sflag [#allocation4], 1
    %17 = vsyncpa %s16, 0
    loop: start=0, step=1, limit=4
    $region2: #{tpu_custom_call.1} parent=1 // loop_pre_header
      _
    $region3: #{tpu_custom_call.1} parent=1 // loop_header
      %s19 = sphi 0, %s23
      %p20 = scmp.ge.s32.totalorder %s19, 4
      %s29 = sphi 0, %s31
      %s32 = sphi 0, %s29
      %s33 = sphi 0, %s32
      %s49 = sphi 0, %s33
      %s53 = sphi 0, %s53
      %s55 = sphi 0, %s53
      %s56 = sphi 0, %s55
      %s70 = sphi 0, %s56
      %s74 = sphi 0, %s74
      %s76 = sphi 0, %s74
      %s77 = sphi 0, %s76
      %s91 = sphi 0, %s77
      %s95 = sphi 0, %s95
      %s97 = sphi 0, %s95
      %s98 = sphi 0, %s97
      %s112 = sphi 0, %s98
      %s116 = sphi 0, %s116
      %s118 = sphi 0, %s116
      %s119 = sphi 0, %s118
      %s133 = sphi 0, %s119
      %s137 = sphi 0, %s137
      %s139 = sphi 0, %s137
      %s140 = sphi 0, %s139
      %s154 = sphi 0, %s140
      %s158 = sphi 0, %s158
      %s160 = sphi 0, %s158
      %s161 = sphi 0, %s160
      %s175 = sphi 0, %s161
      %s179 = sphi 0, %s179
      %s181 = sphi 0, %s179
      %s182 = sphi 0, %s181
      %s196 = sphi 0, %s182
      %s200 = sphi 0, %s200
      %s202 = sphi 0, %s200
      %s203 = sphi 0, %s202
      %s217 = sphi 0, %s203
      %s223 = sphi 0, %s225
      %s226 = sphi 0, %s223
      %s227 = sphi 0, %s226
      %s243 = sphi 0, %s227
    $region4: #{tpu_custom_call.1} parent=1 // loop_header_branch
      %22 = sbr.rel (%p20) target = $region8
    $region5: #{tpu_custom_call.1} parent=1 // loop_body
      %s24 = ssub.s32 %s19, 1
      %s25 = ssub.s32 %s19, 2
      %s26 = sadd.s32 %s19, 1
      %s27 = ssub.s32 %s19, %s26
      %p28 = scmp.eq.s32.totalorder %s27, 0
      %s30 = sadd.s32 %s29, 1
      %s31 = scalar_select %p28, %s29, %s30
      %p34 = pneg %p28
      %p35 = scmp.eq.s32.totalorder %s19, 1
      %p36 = por %p34, %p35
      %p37 = scmp.ne.s32.totalorder %s29, %s32
      %p38 = scmp.eq.s32.totalorder %s19, 0
      %p39 = por %p37, %p38
      %p40 = scmp.ne.s32.totalorder %s29, %s32
      %p41 = scmp.eq.s32.totalorder %s24, 1
      %p42 = por %p40, %p41
      %p43 = scmp.ne.s32.totalorder %s32, %s33
      %p44 = scmp.eq.s32.totalorder %s24, 0
      %p45 = por %p43, %p44
      %p46 = scmp.ne.s32.totalorder %s32, %s33
      %p47 = scmp.eq.s32.totalorder %s25, 1
      %p48 = por %p46, %p47
      %p50 = scmp.ne.s32.totalorder %s33, %s49
      %p51 = scmp.eq.s32.totalorder %s25, 0
      %p52 = por %p50, %p51
      %s54 = sadd.s32 %s53, 1
      %p57 = scmp.eq.s32.totalorder %s19, 1
      %p58 = scmp.ne.s32.totalorder %s53, %s55
      %p59 = scmp.eq.s32.totalorder %s19, 0
      %p60 = por %p58, %p59
      %p61 = scmp.ne.s32.totalorder %s53, %s55
      %p62 = scmp.eq.s32.totalorder %s24, 1
      %p63 = por %p61, %p62
      %p64 = scmp.ne.s32.totalorder %s55, %s56
      %p65 = scmp.eq.s32.totalorder %s24, 0
      %p66 = por %p64, %p65
      %p67 = scmp.ne.s32.totalorder %s55, %s56
      %p68 = scmp.eq.s32.totalorder %s25, 1
      %p69 = por %p67, %p68
      %p71 = scmp.ne.s32.totalorder %s56, %s70
      %p72 = scmp.eq.s32.totalorder %s25, 0
      %p73 = por %p71, %p72
      %s75 = sadd.s32 %s74, 1
      %p78 = scmp.eq.s32.totalorder %s19, 1
      %p79 = scmp.ne.s32.totalorder %s74, %s76
      %p80 = scmp.eq.s32.totalorder %s19, 0
      %p81 = por %p79, %p80
      %p82 = scmp.ne.s32.totalorder %s74, %s76
      %p83 = scmp.eq.s32.totalorder %s24, 1
      %p84 = por %p82, %p83
      %p85 = scmp.ne.s32.totalorder %s76, %s77
      %p86 = scmp.eq.s32.totalorder %s24, 0
      %p87 = por %p85, %p86
      %p88 = scmp.ne.s32.totalorder %s76, %s77
      %p89 = scmp.eq.s32.totalorder %s25, 1
      %p90 = por %p88, %p89
      %p92 = scmp.ne.s32.totalorder %s77, %s91
      %p93 = scmp.eq.s32.totalorder %s25, 0
      %p94 = por %p92, %p93
      %s96 = sadd.s32 %s95, 1
      %p99 = scmp.eq.s32.totalorder %s19, 1
      %p100 = scmp.ne.s32.totalorder %s95, %s97
      %p101 = scmp.eq.s32.totalorder %s19, 0
      %p102 = por %p100, %p101
      %p103 = scmp.ne.s32.totalorder %s95, %s97
      %p104 = scmp.eq.s32.totalorder %s24, 1
      %p105 = por %p103, %p104
      %p106 = scmp.ne.s32.totalorder %s97, %s98
      %p107 = scmp.eq.s32.totalorder %s24, 0
      %p108 = por %p106, %p107
      %p109 = scmp.ne.s32.totalorder %s97, %s98
      %p110 = scmp.eq.s32.totalorder %s25, 1
      %p111 = por %p109, %p110
      %p113 = scmp.ne.s32.totalorder %s98, %s112
      %p114 = scmp.eq.s32.totalorder %s25, 0
      %p115 = por %p113, %p114
      %s117 = sadd.s32 %s116, 1
      %p120 = scmp.eq.s32.totalorder %s19, 1
      %p121 = scmp.ne.s32.totalorder %s116, %s118
      %p122 = scmp.eq.s32.totalorder %s19, 0
      %p123 = por %p121, %p122
      %p124 = scmp.ne.s32.totalorder %s116, %s118
      %p125 = scmp.eq.s32.totalorder %s24, 1
      %p126 = por %p124, %p125
      %p127 = scmp.ne.s32.totalorder %s118, %s119
      %p128 = scmp.eq.s32.totalorder %s24, 0
      %p129 = por %p127, %p128
      %p130 = scmp.ne.s32.totalorder %s118, %s119
      %p131 = scmp.eq.s32.totalorder %s25, 1
      %p132 = por %p130, %p131
      %p134 = scmp.ne.s32.totalorder %s119, %s133
      %p135 = scmp.eq.s32.totalorder %s25, 0
      %p136 = por %p134, %p135
      %s138 = sadd.s32 %s137, 1
      %p141 = scmp.eq.s32.totalorder %s19, 1
      %p142 = scmp.ne.s32.totalorder %s137, %s139
      %p143 = scmp.eq.s32.totalorder %s19, 0
      %p144 = por %p142, %p143
      %p145 = scmp.ne.s32.totalorder %s137, %s139
      %p146 = scmp.eq.s32.totalorder %s24, 1
      %p147 = por %p145, %p146
      %p148 = scmp.ne.s32.totalorder %s139, %s140
      %p149 = scmp.eq.s32.totalorder %s24, 0
      %p150 = por %p148, %p149
      %p151 = scmp.ne.s32.totalorder %s139, %s140
      %p152 = scmp.eq.s32.totalorder %s25, 1
      %p153 = por %p151, %p152
      %p155 = scmp.ne.s32.totalorder %s140, %s154
      %p156 = scmp.eq.s32.totalorder %s25, 0
      %p157 = por %p155, %p156
      %s159 = sadd.s32 %s158, 1
      %p162 = scmp.eq.s32.totalorder %s19, 1
      %p163 = scmp.ne.s32.totalorder %s158, %s160
      %p164 = scmp.eq.s32.totalorder %s19, 0
      %p165 = por %p163, %p164
      %p166 = scmp.ne.s32.totalorder %s158, %s160
      %p167 = scmp.eq.s32.totalorder %s24, 1
      %p168 = por %p166, %p167
      %p169 = scmp.ne.s32.totalorder %s160, %s161
      %p170 = scmp.eq.s32.totalorder %s24, 0
      %p171 = por %p169, %p170
      %p172 = scmp.ne.s32.totalorder %s160, %s161
      %p173 = scmp.eq.s32.totalorder %s25, 1
      %p174 = por %p172, %p173
      %p176 = scmp.ne.s32.totalorder %s161, %s175
      %p177 = scmp.eq.s32.totalorder %s25, 0
      %p178 = por %p176, %p177
      %s180 = sadd.s32 %s179, 1
      %p183 = scmp.eq.s32.totalorder %s19, 1
      %p184 = scmp.ne.s32.totalorder %s179, %s181
      %p185 = scmp.eq.s32.totalorder %s19, 0
      %p186 = por %p184, %p185
      %p187 = scmp.ne.s32.totalorder %s179, %s181
      %p188 = scmp.eq.s32.totalorder %s24, 1
      %p189 = por %p187, %p188
      %p190 = scmp.ne.s32.totalorder %s181, %s182
      %p191 = scmp.eq.s32.totalorder %s24, 0
      %p192 = por %p190, %p191
      %p193 = scmp.ne.s32.totalorder %s181, %s182
      %p194 = scmp.eq.s32.totalorder %s25, 1
      %p195 = por %p193, %p194
      %p197 = scmp.ne.s32.totalorder %s182, %s196
      %p198 = scmp.eq.s32.totalorder %s25, 0
      %p199 = por %p197, %p198
      %s201 = sadd.s32 %s200, 1
      %p204 = scmp.eq.s32.totalorder %s19, 1
      %p205 = scmp.ne.s32.totalorder %s200, %s202
      %p206 = scmp.eq.s32.totalorder %s19, 0
      %p207 = por %p205, %p206
      %p208 = scmp.ne.s32.totalorder %s200, %s202
      %p209 = scmp.eq.s32.totalorder %s24, 1
      %p210 = por %p208, %p209
      %p211 = scmp.ne.s32.totalorder %s202, %s203
      %p212 = scmp.eq.s32.totalorder %s24, 0
      %p213 = por %p211, %p212
      %p214 = scmp.ne.s32.totalorder %s202, %s203
      %p215 = scmp.eq.s32.totalorder %s25, 1
      %p216 = por %p214, %p215
      %p218 = scmp.ne.s32.totalorder %s203, %s217
      %p219 = scmp.eq.s32.totalorder %s25, 0
      %p220 = por %p218, %p219
      %s221 = ssub.s32 %s19, %s26
      %p222 = scmp.eq.s32.totalorder %s221, 0
      %s224 = sadd.s32 %s223, 1
      %s225 = scalar_select %p222, %s223, %s224
      %p228 = pneg %p222
      %p229 = scmp.eq.s32.totalorder %s19, 1
      %p230 = por %p228, %p229
      %p231 = scmp.ne.s32.totalorder %s223, %s226
      %p232 = scmp.eq.s32.totalorder %s19, 0
      %p233 = por %p231, %p232
      %p234 = scmp.ne.s32.totalorder %s223, %s226
      %p235 = scmp.eq.s32.totalorder %s24, 1
      %p236 = por %p234, %p235
      %p237 = scmp.ne.s32.totalorder %s226, %s227
      %p238 = scmp.eq.s32.totalorder %s24, 0
      %p239 = por %p237, %p238
      %p240 = scmp.ne.s32.totalorder %s226, %s227
      %p241 = scmp.eq.s32.totalorder %s25, 1
      %p242 = por %p240, %p241
      %p244 = scmp.ne.s32.totalorder %s227, %s243
      %p245 = scmp.eq.s32.totalorder %s25, 0
      %p246 = por %p244, %p245
      %p247 = scmp.le.s32.totalorder 1, %s19
      %p248 = scmp.lt.s32.totalorder %s19, 3
      %p249 = pnand %p247, %p248
      %p250 = pneg %p249
      // Predicated region
      $region9: #{tpu_custom_call.1} parent=5 // pred_check
        _
      $region10: #{tpu_custom_call.1} parent=5 // pred_check_branch
        %252 = sbr.rel (%p249) target = $region12
      $region11: #{tpu_custom_call.1} parent=5 // pred_region
        %s253 = ssub.s32 %s19, 1
        // Predicated region
        $region13: #{tpu_custom_call.1} parent=11 // pred_check
          %p254 = pneg %p66
        $region14: #{tpu_custom_call.1} parent=11 // pred_check_branch
          %256 = sbr.rel (%p254) target = $region16
        $region15: #{tpu_custom_call.1} parent=11 // pred_region
          _
        $region16: #{tpu_custom_call.1} parent=11 // pred_fallthru
          _
        // Predicated region
        $region17: #{tpu_custom_call.1} parent=11 // pred_check
          %p257 = pneg %p87
        $region18: #{tpu_custom_call.1} parent=11 // pred_check_branch
          %259 = sbr.rel (%p257) target = $region20
        $region19: #{tpu_custom_call.1} parent=11 // pred_region
          _
        $region20: #{tpu_custom_call.1} parent=11 // pred_fallthru
          _
        // Predicated region
        $region21: #{tpu_custom_call.1} parent=11 // pred_check
          %p260 = pneg %p108
        $region22: #{tpu_custom_call.1} parent=11 // pred_check_branch
          %262 = sbr.rel (%p260) target = $region24
        $region23: #{tpu_custom_call.1} parent=11 // pred_region
          _
        $region24: #{tpu_custom_call.1} parent=11 // pred_fallthru
          _
        // Predicated region
        $region25: #{tpu_custom_call.1} parent=11 // pred_check
          %p263 = pneg %p129
        $region26: #{tpu_custom_call.1} parent=11 // pred_check_branch
          %265 = sbr.rel (%p263) target = $region28
        $region27: #{tpu_custom_call.1} parent=11 // pred_region
          %s267 = ssub.s32 512, 512
          %268 = vsyncadd [#allocation3], %s267
          %s269 = sshll.u32 [#allocation2], 4
          %s270 = int_to_ptr.vmem [resolvable:$true] %s269
          %275 = dma.hbm_to_vmem [thread:$0]  %s4, 512, %s270, [#allocation3], 128, 128, 8
        $region28: #{tpu_custom_call.1} parent=11 // pred_fallthru
          _
        // Predicated region
        $region29: #{tpu_custom_call.1} parent=11 // pred_check
          %p276 = pneg %p150
        $region30: #{tpu_custom_call.1} parent=11 // pred_check_branch
          %278 = sbr.rel (%p276) target = $region32
        $region31: #{tpu_custom_call.1} parent=11 // pred_region
          _
        $region32: #{tpu_custom_call.1} parent=11 // pred_fallthru
          _
        // Predicated region
        $region33: #{tpu_custom_call.1} parent=11 // pred_check
          %p279 = pneg %p171
        $region34: #{tpu_custom_call.1} parent=11 // pred_check_branch
          %281 = sbr.rel (%p279) target = $region36
        $region35: #{tpu_custom_call.1} parent=11 // pred_region
          _
        $region36: #{tpu_custom_call.1} parent=11 // pred_fallthru
          _
        // Predicated region
        $region37: #{tpu_custom_call.1} parent=11 // pred_check
          %p282 = pneg %p192
        $region38: #{tpu_custom_call.1} parent=11 // pred_check_branch
          %284 = sbr.rel (%p282) target = $region40
        $region39: #{tpu_custom_call.1} parent=11 // pred_region
          _
        $region40: #{tpu_custom_call.1} parent=11 // pred_fallthru
          _
        // Predicated region
        $region41: #{tpu_custom_call.1} parent=11 // pred_check
          %p285 = pneg %p213
        $region42: #{tpu_custom_call.1} parent=11 // pred_check_branch
          %287 = sbr.rel (%p285) target = $region44
        $region43: #{tpu_custom_call.1} parent=11 // pred_region
          _
        $region44: #{tpu_custom_call.1} parent=11 // pred_fallthru
          _
      $region12: #{tpu_custom_call.1} parent=5 // pred_fallthru
        _
      %p288 = scmp.lt.s32.totalorder %s19, 2
      // Predicated region
      $region45: #{tpu_custom_call.1} parent=5 // pred_check
        %p289 = pneg %p288
      $region46: #{tpu_custom_call.1} parent=5 // pred_check_branch
        %291 = sbr.rel (%p289) target = $region48
      $region47: #{tpu_custom_call.1} parent=5 // pred_region
        // Predicated region
        $region49: #{tpu_custom_call.1} parent=47 // pred_check
          %p292 = pneg %p39
        $region50: #{tpu_custom_call.1} parent=47 // pred_check_branch
          %294 = sbr.rel (%p292) target = $region52
        $region51: #{tpu_custom_call.1} parent=47 // pred_region
          %s295 = smul.u32 4, %s19
          %p296 = scmp.lt.s32.totalorder %s295, 7
          %s297 = scalar_select %p296, %s295, 7
          %s298 = smul.addr %s297, 2
          %s299 = smul.addr %s298, 8
          %s300 = scalar_lea.vmem %s0, %s299
          %s301 = smul.u32 4, %s19
        $region52: #{tpu_custom_call.1} parent=47 // pred_fallthru
          _
      $region48: #{tpu_custom_call.1} parent=5 // pred_fallthru
        _
      %p302 = scmp.le.s32.totalorder 1, %s19
      %p303 = scmp.lt.s32.totalorder %s19, 3
      %p304 = pnand %p302, %p303
      %p305 = pneg %p304
      // Predicated region
      $region53: #{tpu_custom_call.1} parent=5 // pred_check
        _
      $region54: #{tpu_custom_call.1} parent=5 // pred_check_branch
        %307 = sbr.rel (%p304) target = $region56
      $region55: #{tpu_custom_call.1} parent=5 // pred_region
        %s308 = ssub.s32 %s19, 1
        // Predicated region
        $region57: #{tpu_custom_call.1} parent=55 // pred_check
          %p309 = pneg %p129
        $region58: #{tpu_custom_call.1} parent=55 // pred_check_branch
          %311 = sbr.rel (%p309) target = $region60
        $region59: #{tpu_custom_call.1} parent=55 // pred_region
          %312 = dma.done [#allocation3], 512
        $region60: #{tpu_custom_call.1} parent=55 // pred_fallthru
          _
        %s313 = smul.u32 4, %s24
        %p314 = scmp.lt.s32.totalorder %s313, 7
        %s315 = scalar_select %p314, %s313, 7
        %s316 = smul.addr %s315, 2
        %s317 = smul.addr %s316, 8
        %s318 = scalar_lea.vmem %s0, %s317
        %p319 = pneg %p45
        %p320 = pneg %p42
        %p321 = pneg %p66
        %p322 = pneg %p63
        %p323 = pneg %p87
        %p324 = pneg %p84
        %p325 = pneg %p108
        %p326 = pneg %p105
        %p327 = pneg %p129
        %p328 = pneg %p126
        %p329 = pneg %p150
        %p330 = pneg %p147
        %p331 = pneg %p171
        %p332 = pneg %p168
        %p333 = pneg %p192
        %p334 = pneg %p189
        %p335 = pneg %p213
        %p336 = pneg %p210
        %p337 = pneg %p239
        %p338 = pneg %p236
        %s339 = sand.u32 %s226, 1
        %s340 = scalar_lea.sflag [#allocation4], %s339
        %s341 = sand.u32 %s226, 1
        %s342 = smul.addr %s341, 64
        %s343 = scalar_lea.vmem [#allocation5], %s342
        %s344 = smul.u32 4, %s24
        %p345 = scmp.lt.s32.totalorder %s344, 7
        %s346 = scalar_select %p345, %s344, 7
        %s347 = smul.addr %s346, 2
        %s348 = smul.addr %s347, 8
        %s349 = scalar_lea.vmem %s0, %s348
        %s350 = smul.u32 4, %s24
        %s351 = smul.u32 4, %s24
        %v352 = vld [vmem:[%s349] sm:$0xff]
        %v353 = vld [vmem:[%s349 + $0x8] sm:$0xff]
        %v354 = vld [vmem:[%s349 + $0x10] sm:$0xff]
        %v355 = vld [vmem:[%s349 + $0x18] sm:$0xff]
        %v356 = vld [vmem:[%s349 + $0x20] sm:$0xff]
        %v357 = vld [vmem:[%s349 + $0x28] sm:$0xff]
        %v358 = vld [vmem:[%s349 + $0x30] sm:$0xff]
        %v359 = vld [vmem:[%s349 + $0x38] sm:$0xff]
        %v360 = vld [vmem:[%s3] sm:$0xff]
        %v361 = vld [vmem:[%s3 + $0x8] sm:$0xff]
        %v362 = vld [vmem:[%s3 + $0x10] sm:$0x1]
        %v363 = vld [vmem:[%s3 + $0x18] sm:$0x1]
        %v364 = vld [vmem:[%s8] sm:$0xff]
        %v365 = vld [vmem:[%s8 + $0x8] sm:$0xff]
        %v366 = vld [vmem:[%s8 + $0x10] sm:$0xff]
        %v367 = vld [vmem:[%s8 + $0x18] sm:$0xff]
        %v368 = vld [vmem:[%s6] sm:$0xff]
        %v369 = vld [vmem:[%s6 + $0x8] sm:$0xff]
        %v370 = vld [vmem:[%s6 + $0x10] sm:$0xff]
        %v371 = vld [vmem:[%s6 + $0x18] sm:$0xff]
        %v372 = vld [vmem:[%s7] sm:$0xff]
        %v373 = vld [vmem:[%s1] sm:$0xff]
        %v374 = vld [vmem:[%s1 + $0x8] sm:$0xff]
        %v375 = vld [vmem:[%s1 + $0x10] sm:$0xff]
        %v376 = vld [vmem:[%s1 + $0x18] sm:$0xff]
        %v377 = vld [vmem:[%s1 + $0x20] sm:$0xff]
        %v378 = vld [vmem:[%s1 + $0x28] sm:$0xff]
        %v379 = vld [vmem:[%s1 + $0x30] sm:$0xff]
        %v380 = vld [vmem:[%s1 + $0x38] sm:$0xff]
        %v381 = vld [vmem:[%s1 + $0x40] sm:$0xff]
        %v382 = vld [vmem:[%s1 + $0x48] sm:$0xff]
        %v383 = vld [vmem:[%s1 + $0x50] sm:$0xff]
        %v384 = vld [vmem:[%s1 + $0x58] sm:$0xff]
        %v385 = vld [vmem:[%s1 + $0x60] sm:$0xff]
        %v386 = vld [vmem:[%s1 + $0x68] sm:$0xff]
        %v387 = vld [vmem:[%s1 + $0x70] sm:$0xff]
        %v388 = vld [vmem:[%s1 + $0x78] sm:$0xff]
        %v389 = vld [vmem:[%s1 + $0x80] sm:$0xff]
        %v390 = vld [vmem:[%s1 + $0x88] sm:$0xff]
        %v391 = vld [vmem:[%s1 + $0x90] sm:$0xff]
        %v392 = vld [vmem:[%s1 + $0x98] sm:$0xff]
        %v393 = vld [vmem:[%s1 + $0xa0] sm:$0xff]
        %v394 = vld [vmem:[%s1 + $0xa8] sm:$0xff]
        %v395 = vld [vmem:[%s1 + $0xb0] sm:$0xff]
        %v396 = vld [vmem:[%s1 + $0xb8] sm:$0xff]
        %v397 = vld [vmem:[%s1 + $0xc0] sm:$0xff]
        %v398 = vld [vmem:[%s1 + $0xc8] sm:$0xff]
        %v399 = vld [vmem:[%s1 + $0xd0] sm:$0xff]
        %v400 = vld [vmem:[%s1 + $0xd8] sm:$0xff]
        %v401 = vld [vmem:[%s1 + $0xe0] sm:$0xff]
        %v402 = vld [vmem:[%s1 + $0xe8] sm:$0xff]
        %v403 = vld [vmem:[%s1 + $0xf0] sm:$0xff]
        %v404 = vld [vmem:[%s1 + $0xf8] sm:$0xff]
        %405 = vmatprep.subr.mxu0 0.0
        %406 = vmatpush1.msra.mxu0 %v388
        %407 = vmatprep.subr.mxu0 0.0
        %408 = vmatpush1.msra.mxu0 %v387
        %409 = vmatprep.subr.mxu0 0.0
        %410 = vmatpush1.msra.mxu0 %v386
        %411 = vmatprep.subr.mxu0 0.0
        %412 = vmatpush1.msra.mxu0 %v385
        %413 = vmatprep.subr.mxu0 0.0
        %414 = vmatpush1.msra.mxu0 %v384
        %415 = vmatprep.subr.mxu0 0.0
        %416 = vmatpush1.msra.mxu0 %v383
        %417 = vmatprep.subr.mxu0 0.0
        %418 = vmatpush1.msra.mxu0 %v382
        %419 = vmatprep.subr.mxu0 0.0
        %420 = vmatpush1.msra.mxu0 %v381
        %421 = vmatprep.subr.mxu0 0.0
        %422 = vmatpush1.msra.mxu0 %v380
        %423 = vmatprep.subr.mxu0 0.0
        %424 = vmatpush1.msra.mxu0 %v379
        %425 = vmatprep.subr.mxu0 0.0
        %426 = vmatpush1.msra.mxu0 %v378
        %427 = vmatprep.subr.mxu0 0.0
        %428 = vmatpush1.msra.mxu0 %v377
        %429 = vmatprep.subr.mxu0 0.0
        %430 = vmatpush1.msra.mxu0 %v376
        %431 = vmatprep.subr.mxu0 0.0
        %432 = vmatpush1.msra.mxu0 %v375
        %433 = vmatprep.subr.mxu0 0.0
        %434 = vmatpush1.msra.mxu0 %v374
        %435 = vmatprep.subr.mxu0 0.0
        %436 = vmatpush1.msra.mxu0 %v373
        %437 = vmatprep.subr.mxu0 0.0
        %438 = vmatpush2.msra.mxu0 %v404
        %439 = vmatprep.subr.mxu0 0.0
        %440 = vmatpush2.msra.mxu0 %v403
        %441 = vmatprep.subr.mxu0 0.0
        %442 = vmatpush2.msra.mxu0 %v402
        %443 = vmatprep.subr.mxu0 0.0
        %444 = vmatpush2.msra.mxu0 %v401
        %445 = vmatprep.subr.mxu0 0.0
        %446 = vmatpush2.msra.mxu0 %v400
        %447 = vmatprep.subr.mxu0 0.0
        %448 = vmatpush2.msra.mxu0 %v399
        %449 = vmatprep.subr.mxu0 0.0
        %450 = vmatpush2.msra.mxu0 %v398
        %451 = vmatprep.subr.mxu0 0.0
        %452 = vmatpush2.msra.mxu0 %v397
        %453 = vmatprep.subr.mxu0 0.0
        %454 = vmatpush2.msra.mxu0 %v396
        %455 = vmatprep.subr.mxu0 0.0
        %456 = vmatpush2.msra.mxu0 %v395
        %457 = vmatprep.subr.mxu0 0.0
        %458 = vmatpush2.msra.mxu0 %v394
        %459 = vmatprep.subr.mxu0 0.0
        %460 = vmatpush2.msra.mxu0 %v393
        %461 = vmatprep.subr.mxu0 0.0
        %462 = vmatpush2.msra.mxu0 %v392
        %463 = vmatprep.subr.mxu0 0.0
        %464 = vmatpush2.msra.mxu0 %v391
        %465 = vmatprep.subr.mxu0 0.0
        %466 = vmatpush2.msra.mxu0 %v390
        %467 = vmatprep.subr.mxu0 0.0
        %468 = vmatpush2.msra.mxu0 %v389
        %469 = vmatprep.mubr.f32.mxu0 %v353
        %470 = vmatmul.mubr.f32.gmra.mxu0 %v352
        %v471 = vpop.f32.mrf.mxu0
        %v472 = vadd.f32 0.0, %v471
        %v473 = vpop.f32.mrf.mxu0
        %474 = vmatprep.mubr.f32.mxu0 %v355
        %475 = vmatmul.mubr.f32.gmra.mxu0 %v354
        %v476 = vpop.f32.mrf.mxu0
        %v477 = vadd.f32 0.0, %v476
        %v478 = vpop.f32.mrf.mxu0
        %479 = vmatprep.mubr.f32.mxu0 %v357
        %480 = vmatmul.mubr.f32.gmra.mxu0 %v356
        %v481 = vpop.f32.mrf.mxu0
        %v482 = vadd.f32 0.0, %v481
        %v483 = vpop.f32.mrf.mxu0
        %484 = vmatprep.mubr.f32.mxu0 %v359
        %485 = vmatmul.mubr.f32.gmra.mxu0 %v358
        %v486 = vpop.f32.mrf.mxu0
        %v487 = vadd.f32 0.0, %v486
        %v488 = vpop.f32.mrf.mxu0
        %489 = vdwg.mxu0
        %v490 = vld [vmem:[#allocation2] sm:$0xff]
        %v491 = vld [vmem:[#allocation2 + $0x8] sm:$0xff]
        %v492 = vld [vmem:[#allocation2 + $0x10] sm:$0xff]
        %v493 = vld [vmem:[#allocation2 + $0x18] sm:$0xff]
        %495 = vset.pattern.permute.xlu0 0
        %496 = vperm.xlu0 %495, %v364
        %v497 = vpop.permute.xlu0 %496
        %500 = vset.pattern.permute.xlu0 0
        %501 = vperm.xlu0 %500, %v365
        %v502 = vpop.permute.xlu0 %501
        %505 = vset.pattern.permute.xlu0 0
        %506 = vperm.xlu0 %505, %v366
        %v507 = vpop.permute.xlu0 %506
        %510 = vset.pattern.permute.xlu0 0
        %511 = vperm.xlu0 %510, %v367
        %v512 = vpop.permute.xlu0 %511
        %vm514 = vcmask 261120
        %v516 = vsel %vm514, %v490, 0
        %v519 = vsel %vm514, %v491, 0
        %v522 = vsel %vm514, %v492, 0
        %v525 = vsel %vm514, %v493, 0
        %527 = vmatprep.subr.mxu0 0.0
        %528 = vmatpush1.msra.mxu0 0.0
        %529 = vmatprep.subr.mxu0 0.0
        %530 = vmatpush1.msra.mxu0 0.0
        %531 = vmatprep.subr.mxu0 0.0
        %532 = vmatpush1.msra.mxu0 0.0
        %533 = vmatprep.subr.mxu0 0.0
        %534 = vmatpush1.msra.mxu0 0.0
        %535 = vmatprep.subr.mxu0 0.0
        %536 = vmatpush1.msra.mxu0 0.0
        %537 = vmatprep.subr.mxu0 0.0
        %538 = vmatpush1.msra.mxu0 0.0
        %539 = vmatprep.subr.mxu0 0.0
        %540 = vmatpush1.msra.mxu0 0.0
        %541 = vmatprep.subr.mxu0 0.0
        %542 = vmatpush1.msra.mxu0 0.0
        %543 = vmatprep.subr.mxu0 0.0
        %544 = vmatpush1.msra.mxu0 0.0
        %545 = vmatprep.subr.mxu0 0.0
        %546 = vmatpush1.msra.mxu0 0.0
        %547 = vmatprep.subr.mxu0 0.0
        %548 = vmatpush1.msra.mxu0 0.0
        %549 = vmatprep.subr.mxu0 0.0
        %550 = vmatpush1.msra.mxu0 0.0
        %551 = vmatprep.subr.mxu0 0.0
        %552 = vmatpush1.msra.mxu0 %v487
        %553 = vmatprep.subr.mxu0 0.0
        %554 = vmatpush1.msra.mxu0 %v482
        %555 = vmatprep.subr.mxu0 0.0
        %556 = vmatpush1.msra.mxu0 %v477
        %557 = vmatprep.subr.mxu0 0.0
        %558 = vmatpush1.msra.mxu0 %v472
        %559 = vmatprep.subr.mxu0 0.0
        %560 = vmatpush2.msra.mxu0 0.0
        %561 = vmatprep.subr.mxu0 0.0
        %562 = vmatpush2.msra.mxu0 0.0
        %563 = vmatprep.subr.mxu0 0.0
        %564 = vmatpush2.msra.mxu0 0.0
        %565 = vmatprep.subr.mxu0 0.0
        %566 = vmatpush2.msra.mxu0 0.0
        %567 = vmatprep.subr.mxu0 0.0
        %568 = vmatpush2.msra.mxu0 0.0
        %569 = vmatprep.subr.mxu0 0.0
        %570 = vmatpush2.msra.mxu0 0.0
        %571 = vmatprep.subr.mxu0 0.0
        %572 = vmatpush2.msra.mxu0 0.0
        %573 = vmatprep.subr.mxu0 0.0
        %574 = vmatpush2.msra.mxu0 0.0
        %575 = vmatprep.subr.mxu0 0.0
        %576 = vmatpush2.msra.mxu0 0.0
        %577 = vmatprep.subr.mxu0 0.0
        %578 = vmatpush2.msra.mxu0 0.0
        %579 = vmatprep.subr.mxu0 0.0
        %580 = vmatpush2.msra.mxu0 0.0
        %581 = vmatprep.subr.mxu0 0.0
        %582 = vmatpush2.msra.mxu0 0.0
        %583 = vmatprep.subr.mxu0 0.0
        %584 = vmatpush2.msra.mxu0 0.0
        %585 = vmatprep.subr.mxu0 0.0
        %586 = vmatpush2.msra.mxu0 0.0
        %587 = vmatprep.subr.mxu0 0.0
        %588 = vmatpush2.msra.mxu0 0.0
        %589 = vmatprep.subr.mxu0 0.0
        %590 = vmatpush2.msra.mxu0 0.0
        %591 = vmatprep.mubr.f32.mxu0 0.0
        %592 = vmatmul.mubr.f32.gmra.mxu0 %v516
        %v593 = vpop.f32.mrf.mxu0
        %v594 = vadd.f32 %v497, %v593
        %v595 = vpop.f32.mrf.mxu0
        %596 = vmatprep.mubr.f32.mxu0 0.0
        %597 = vmatmul.mubr.f32.gmra.mxu0 %v519
        %v598 = vpop.f32.mrf.mxu0
        %v599 = vadd.f32 %v502, %v598
        %v600 = vpop.f32.mrf.mxu0
        %601 = vmatprep.mubr.f32.mxu0 0.0
        %602 = vmatmul.mubr.f32.gmra.mxu0 %v522
        %v603 = vpop.f32.mrf.mxu0
        %v604 = vadd.f32 %v507, %v603
        %v605 = vpop.f32.mrf.mxu0
        %606 = vmatprep.mubr.f32.mxu0 0.0
        %607 = vmatmul.mubr.f32.gmra.mxu0 %v525
        %v608 = vpop.f32.mrf.mxu0
        %v609 = vadd.f32 %v512, %v608
        %v610 = vpop.f32.mrf.mxu0
        %611 = vdwg.mxu0
        %v612 = vxor.u32 %v594, 2147483648
        %v613 = vxor.u32 %v599, 2147483648
        %v614 = vxor.u32 %v604, 2147483648
        %v615 = vxor.u32 %v609, 2147483648
        %v616 = vmul.f32 %v612, 1.442695
        %v617 = vpow.pop %v616
        %v618 = vmul.f32 %v613, 1.442695
        %v619 = vpow.pop %v618
        %v620 = vmul.f32 %v614, 1.442695
        %v621 = vpow.pop %v620
        %v622 = vmul.f32 %v615, 1.442695
        %v623 = vpow.pop %v622
        %v624 = vadd.f32 %v617, 1.0
        %v625 = vadd.f32 %v619, 1.0
        %v626 = vadd.f32 %v621, 1.0
        %v627 = vadd.f32 %v623, 1.0
        %v628 = vrcp.pop %v624
        %v629 = vmul.f32 1.0, %v628
        %v630 = vrcp.pop %v625
        %v631 = vmul.f32 1.0, %v630
        %v632 = vrcp.pop %v626
        %v633 = vmul.f32 1.0, %v632
        %v634 = vrcp.pop %v627
        %v635 = vmul.f32 1.0, %v634
        %v636 = vld [vmem:[%s2] sm:$0xff]
        %v637 = vld [vmem:[%s2 + $0x8] sm:$0xff]
        %v638 = vld [vmem:[%s2 + $0x10] sm:$0xff]
        %v639 = vld [vmem:[%s2 + $0x18] sm:$0xff]
        %v640 = vld [vmem:[%s2 + $0x20] sm:$0xff]
        %v641 = vld [vmem:[%s2 + $0x28] sm:$0xff]
        %v642 = vld [vmem:[%s2 + $0x30] sm:$0xff]
        %v643 = vld [vmem:[%s2 + $0x38] sm:$0xff]
        %v644 = vld [vmem:[%s2 + $0x40] sm:$0xff]
        %v645 = vld [vmem:[%s2 + $0x48] sm:$0xff]
        %v646 = vld [vmem:[%s2 + $0x50] sm:$0xff]
        %v647 = vld [vmem:[%s2 + $0x58] sm:$0xff]
        %v648 = vld [vmem:[%s2 + $0x60] sm:$0xff]
        %v649 = vld [vmem:[%s2 + $0x68] sm:$0xff]
        %v650 = vld [vmem:[%s2 + $0x70] sm:$0xff]
        %v651 = vld [vmem:[%s2 + $0x78] sm:$0xff]
        %v653 = vsel %vm514, %v629, 0
        %v656 = vsel %vm514, %v631, 0
        %v659 = vsel %vm514, %v633, 0
        %v662 = vsel %vm514, %v635, 0
        %664 = vmatprep.subr.mxu0 0.0
        %665 = vmatpush1.msra.mxu0 0.0
        %666 = vmatprep.subr.mxu0 0.0
        %667 = vmatpush1.msra.mxu0 0.0
        %668 = vmatprep.subr.mxu0 0.0
        %669 = vmatpush1.msra.mxu0 0.0
        %670 = vmatprep.subr.mxu0 0.0
        %671 = vmatpush1.msra.mxu0 0.0
        %672 = vmatprep.subr.mxu0 0.0
        %673 = vmatpush1.msra.mxu0 0.0
        %674 = vmatprep.subr.mxu0 0.0
        %675 = vmatpush1.msra.mxu0 0.0
        %676 = vmatprep.subr.mxu0 0.0
        %677 = vmatpush1.msra.mxu0 0.0
        %678 = vmatprep.subr.mxu0 0.0
        %679 = vmatpush1.msra.mxu0 0.0
        %680 = vmatprep.subr.mxu0 0.0
        %681 = vmatpush1.msra.mxu0 0.0
        %682 = vmatprep.subr.mxu0 0.0
        %683 = vmatpush1.msra.mxu0 0.0
        %684 = vmatprep.subr.mxu0 0.0
        %685 = vmatpush1.msra.mxu0 0.0
        %686 = vmatprep.subr.mxu0 0.0
        %687 = vmatpush1.msra.mxu0 0.0
        %688 = vmatprep.subr.mxu0 %v649
        %689 = vmatpush1.msra.mxu0 %v648
        %690 = vmatprep.subr.mxu0 %v645
        %691 = vmatpush1.msra.mxu0 %v644
        %692 = vmatprep.subr.mxu0 %v641
        %693 = vmatpush1.msra.mxu0 %v640
        %694 = vmatprep.subr.mxu0 %v637
        %695 = vmatpush1.msra.mxu0 %v636
        %696 = vmatprep.subr.mxu0 0.0
        %697 = vmatpush2.msra.mxu0 0.0
        %698 = vmatprep.subr.mxu0 0.0
        %699 = vmatpush2.msra.mxu0 0.0
        %700 = vmatprep.subr.mxu0 0.0
        %701 = vmatpush2.msra.mxu0 0.0
        %702 = vmatprep.subr.mxu0 0.0
        %703 = vmatpush2.msra.mxu0 0.0
        %704 = vmatprep.subr.mxu0 0.0
        %705 = vmatpush2.msra.mxu0 0.0
        %706 = vmatprep.subr.mxu0 0.0
        %707 = vmatpush2.msra.mxu0 0.0
        %708 = vmatprep.subr.mxu0 0.0
        %709 = vmatpush2.msra.mxu0 0.0
        %710 = vmatprep.subr.mxu0 0.0
        %711 = vmatpush2.msra.mxu0 0.0
        %712 = vmatprep.subr.mxu0 0.0
        %713 = vmatpush2.msra.mxu0 0.0
        %714 = vmatprep.subr.mxu0 0.0
        %715 = vmatpush2.msra.mxu0 0.0
        %716 = vmatprep.subr.mxu0 0.0
        %717 = vmatpush2.msra.mxu0 0.0
        %718 = vmatprep.subr.mxu0 0.0
        %719 = vmatpush2.msra.mxu0 0.0
        %720 = vmatprep.subr.mxu0 0.0
        %721 = vmatpush2.msra.mxu0 0.0
        %722 = vmatprep.subr.mxu0 0.0
        %723 = vmatpush2.msra.mxu0 0.0
        %724 = vmatprep.subr.mxu0 0.0
        %725 = vmatpush2.msra.mxu0 0.0
        %726 = vmatprep.subr.mxu0 0.0
        %727 = vmatpush2.msra.mxu0 0.0
        %728 = vmatprep.mubr.f32.mxu0 0.0
        %729 = vmatmul.mubr.f32.gmra.mxu0 %v653
        %v730 = vpop.f32.mrf.mxu0
        %v731 = vadd.f32 0.0, %v730
        %v732 = vpop.f32.mrf.mxu0
        %v733 = vadd.f32 0.0, %v732
        %734 = vmatprep.mubr.f32.mxu0 0.0
        %735 = vmatmul.mubr.f32.gmra.mxu0 %v656
        %v736 = vpop.f32.mrf.mxu0
        %v737 = vadd.f32 0.0, %v736
        %v738 = vpop.f32.mrf.mxu0
        %v739 = vadd.f32 0.0, %v738
        %740 = vmatprep.mubr.f32.mxu0 0.0
        %741 = vmatmul.mubr.f32.gmra.mxu0 %v659
        %v742 = vpop.f32.mrf.mxu0
        %v743 = vadd.f32 0.0, %v742
        %v744 = vpop.f32.mrf.mxu0
        %v745 = vadd.f32 0.0, %v744
        %746 = vmatprep.mubr.f32.mxu0 0.0
        %747 = vmatmul.mubr.f32.gmra.mxu0 %v662
        %v748 = vpop.f32.mrf.mxu0
        %v749 = vadd.f32 0.0, %v748
        %v750 = vpop.f32.mrf.mxu0
        %v751 = vadd.f32 0.0, %v750
        %752 = vdwg.mxu0
        %753 = vmatprep.subr.mxu0 0.0
        %754 = vmatpush1.msra.mxu0 0.0
        %755 = vmatprep.subr.mxu0 0.0
        %756 = vmatpush1.msra.mxu0 0.0
        %757 = vmatprep.subr.mxu0 0.0
        %758 = vmatpush1.msra.mxu0 0.0
        %759 = vmatprep.subr.mxu0 0.0
        %760 = vmatpush1.msra.mxu0 0.0
        %761 = vmatprep.subr.mxu0 0.0
        %762 = vmatpush1.msra.mxu0 0.0
        %763 = vmatprep.subr.mxu0 0.0
        %764 = vmatpush1.msra.mxu0 0.0
        %765 = vmatprep.subr.mxu0 0.0
        %766 = vmatpush1.msra.mxu0 0.0
        %767 = vmatprep.subr.mxu0 0.0
        %768 = vmatpush1.msra.mxu0 0.0
        %769 = vmatprep.subr.mxu0 0.0
        %770 = vmatpush1.msra.mxu0 0.0
        %771 = vmatprep.subr.mxu0 0.0
        %772 = vmatpush1.msra.mxu0 0.0
        %773 = vmatprep.subr.mxu0 0.0
        %774 = vmatpush1.msra.mxu0 0.0
        %775 = vmatprep.subr.mxu0 0.0
        %776 = vmatpush1.msra.mxu0 0.0
        %777 = vmatprep.subr.mxu0 %v651
        %778 = vmatpush1.msra.mxu0 %v650
        %779 = vmatprep.subr.mxu0 %v647
        %780 = vmatpush1.msra.mxu0 %v646
        %781 = vmatprep.subr.mxu0 %v643
        %782 = vmatpush1.msra.mxu0 %v642
        %783 = vmatprep.subr.mxu0 %v639
        %784 = vmatpush1.msra.mxu0 %v638
        %785 = vmatprep.subr.mxu0 0.0
        %786 = vmatpush2.msra.mxu0 0.0
        %787 = vmatprep.subr.mxu0 0.0
        %788 = vmatpush2.msra.mxu0 0.0
        %789 = vmatprep.subr.mxu0 0.0
        %790 = vmatpush2.msra.mxu0 0.0
        %791 = vmatprep.subr.mxu0 0.0
        %792 = vmatpush2.msra.mxu0 0.0
        %793 = vmatprep.subr.mxu0 0.0
        %794 = vmatpush2.msra.mxu0 0.0
        %795 = vmatprep.subr.mxu0 0.0
        %796 = vmatpush2.msra.mxu0 0.0
        %797 = vmatprep.subr.mxu0 0.0
        %798 = vmatpush2.msra.mxu0 0.0
        %799 = vmatprep.subr.mxu0 0.0
        %800 = vmatpush2.msra.mxu0 0.0
        %801 = vmatprep.subr.mxu0 0.0
        %802 = vmatpush2.msra.mxu0 0.0
        %803 = vmatprep.subr.mxu0 0.0
        %804 = vmatpush2.msra.mxu0 0.0
        %805 = vmatprep.subr.mxu0 0.0
        %806 = vmatpush2.msra.mxu0 0.0
        %807 = vmatprep.subr.mxu0 0.0
        %808 = vmatpush2.msra.mxu0 0.0
        %809 = vmatprep.subr.mxu0 0.0
        %810 = vmatpush2.msra.mxu0 0.0
        %811 = vmatprep.subr.mxu0 0.0
        %812 = vmatpush2.msra.mxu0 0.0
        %813 = vmatprep.subr.mxu0 0.0
        %814 = vmatpush2.msra.mxu0 0.0
        %815 = vmatprep.subr.mxu0 0.0
        %816 = vmatpush2.msra.mxu0 0.0
        %817 = vmatprep.mubr.f32.mxu0 0.0
        %818 = vmatmul.mubr.f32.gmra.mxu0 %v653
        %v819 = vpop.f32.mrf.mxu0
        %v820 = vadd.f32 0.0, %v819
        %v821 = vpop.f32.mrf.mxu0
        %v822 = vadd.f32 0.0, %v821
        %823 = vmatprep.mubr.f32.mxu0 0.0
        %824 = vmatmul.mubr.f32.gmra.mxu0 %v656
        %v825 = vpop.f32.mrf.mxu0
        %v826 = vadd.f32 0.0, %v825
        %v827 = vpop.f32.mrf.mxu0
        %v828 = vadd.f32 0.0, %v827
        %829 = vmatprep.mubr.f32.mxu0 0.0
        %830 = vmatmul.mubr.f32.gmra.mxu0 %v659
        %v831 = vpop.f32.mrf.mxu0
        %v832 = vadd.f32 0.0, %v831
        %v833 = vpop.f32.mrf.mxu0
        %v834 = vadd.f32 0.0, %v833
        %835 = vmatprep.mubr.f32.mxu0 0.0
        %836 = vmatmul.mubr.f32.gmra.mxu0 %v662
        %v837 = vpop.f32.mrf.mxu0
        %v838 = vadd.f32 0.0, %v837
        %v839 = vpop.f32.mrf.mxu0
        %v840 = vadd.f32 0.0, %v839
        %841 = vdwg.mxu0
        %v842 = vmul.f32 %v352, %v731
        %v843 = vmul.f32 %v353, %v733
        %v844 = vmul.f32 %v354, %v737
        %v845 = vmul.f32 %v355, %v739
        %v846 = vmul.f32 %v356, %v743
        %v847 = vmul.f32 %v357, %v745
        %v848 = vmul.f32 %v358, %v749
        %v849 = vmul.f32 %v359, %v751
        %v850 = vmul.f32 %v842, %v820
        %v851 = vmul.f32 %v843, %v822
        %v852 = vmul.f32 %v844, %v826
        %v853 = vmul.f32 %v845, %v828
        %v854 = vmul.f32 %v846, %v832
        %v855 = vmul.f32 %v847, %v834
        %v856 = vmul.f32 %v848, %v838
        %v857 = vmul.f32 %v849, %v840
        %858 = vmatprep.subr.mxu0 0.0
        %859 = vmatpush1.msra.mxu0 0.00390625
        %860 = vmatprep.subr.mxu0 0.0
        %861 = vmatpush1.msra.mxu0 0.00390625
        %862 = vmatprep.subr.mxu0 0.0
        %863 = vmatpush1.msra.mxu0 0.00390625
        %864 = vmatprep.subr.mxu0 0.0
        %865 = vmatpush1.msra.mxu0 0.00390625
        %866 = vmatprep.subr.mxu0 0.0
        %867 = vmatpush1.msra.mxu0 0.00390625
        %868 = vmatprep.subr.mxu0 0.0
        %869 = vmatpush1.msra.mxu0 0.00390625
        %870 = vmatprep.subr.mxu0 0.0
        %871 = vmatpush1.msra.mxu0 0.00390625
        %872 = vmatprep.subr.mxu0 0.0
        %873 = vmatpush1.msra.mxu0 0.00390625
        %874 = vmatprep.subr.mxu0 0.0
        %875 = vmatpush1.msra.mxu0 0.00390625
        %876 = vmatprep.subr.mxu0 0.0
        %877 = vmatpush1.msra.mxu0 0.00390625
        %878 = vmatprep.subr.mxu0 0.0
        %879 = vmatpush1.msra.mxu0 0.00390625
        %880 = vmatprep.subr.mxu0 0.0
        %881 = vmatpush1.msra.mxu0 0.00390625
        %882 = vmatprep.subr.mxu0 0.0
        %883 = vmatpush1.msra.mxu0 0.00390625
        %884 = vmatprep.subr.mxu0 0.0
        %885 = vmatpush1.msra.mxu0 0.00390625
        %886 = vmatprep.subr.mxu0 0.0
        %887 = vmatpush1.msra.mxu0 0.00390625
        %888 = vmatprep.subr.mxu0 0.0
        %889 = vmatpush1.msra.mxu0 0.00390625
        %890 = vmatprep.subr.mxu0 0.0
        %891 = vmatpush2.msra.mxu0 0.00390625
        %892 = vmatprep.subr.mxu0 0.0
        %893 = vmatpush2.msra.mxu0 0.00390625
        %894 = vmatprep.subr.mxu0 0.0
        %895 = vmatpush2.msra.mxu0 0.00390625
        %896 = vmatprep.subr.mxu0 0.0
        %897 = vmatpush2.msra.mxu0 0.00390625
        %898 = vmatprep.subr.mxu0 0.0
        %899 = vmatpush2.msra.mxu0 0.00390625
        %900 = vmatprep.subr.mxu0 0.0
        %901 = vmatpush2.msra.mxu0 0.00390625
        %902 = vmatprep.subr.mxu0 0.0
        %903 = vmatpush2.msra.mxu0 0.00390625
        %904 = vmatprep.subr.mxu0 0.0
        %905 = vmatpush2.msra.mxu0 0.00390625
        %906 = vmatprep.subr.mxu0 0.0
        %907 = vmatpush2.msra.mxu0 0.00390625
        %908 = vmatprep.subr.mxu0 0.0
        %909 = vmatpush2.msra.mxu0 0.00390625
        %910 = vmatprep.subr.mxu0 0.0
        %911 = vmatpush2.msra.mxu0 0.00390625
        %912 = vmatprep.subr.mxu0 0.0
        %913 = vmatpush2.msra.mxu0 0.00390625
        %914 = vmatprep.subr.mxu0 0.0
        %915 = vmatpush2.msra.mxu0 0.00390625
        %916 = vmatprep.subr.mxu0 0.0
        %917 = vmatpush2.msra.mxu0 0.00390625
        %918 = vmatprep.subr.mxu0 0.0
        %919 = vmatpush2.msra.mxu0 0.00390625
        %920 = vmatprep.subr.mxu0 0.0
        %921 = vmatpush2.msra.mxu0 0.00390625
        %922 = vmatprep.mubr.f32.mxu0 %v851
        %923 = vmatmul.mubr.f32.gmra.mxu0 %v850
        %v924 = vpop.f32.mrf.mxu0
        %v925 = vadd.f32 0.0, %v924
        %v926 = vpop.f32.mrf.mxu0
        %927 = vmatprep.mubr.f32.mxu0 %v853
        %928 = vmatmul.mubr.f32.gmra.mxu0 %v852
        %v929 = vpop.f32.mrf.mxu0
        %v930 = vadd.f32 0.0, %v929
        %v931 = vpop.f32.mrf.mxu0
        %932 = vmatprep.mubr.f32.mxu0 %v855
        %933 = vmatmul.mubr.f32.gmra.mxu0 %v854
        %v934 = vpop.f32.mrf.mxu0
        %v935 = vadd.f32 0.0, %v934
        %v936 = vpop.f32.mrf.mxu0
        %937 = vmatprep.mubr.f32.mxu0 %v857
        %938 = vmatmul.mubr.f32.gmra.mxu0 %v856
        %v939 = vpop.f32.mrf.mxu0
        %v940 = vadd.f32 0.0, %v939
        %v941 = vpop.f32.mrf.mxu0
        %942 = vdwg.mxu0
        %v943 = vmul.f32 %v850, %v850
        %v944 = vmul.f32 %v851, %v851
        %v945 = vmul.f32 %v852, %v852
        %v946 = vmul.f32 %v853, %v853
        %v947 = vmul.f32 %v854, %v854
        %v948 = vmul.f32 %v855, %v855
        %v949 = vmul.f32 %v856, %v856
        %v950 = vmul.f32 %v857, %v857
        %951 = vmatprep.subr.mxu0 0.0
        %952 = vmatpush1.msra.mxu0 0.00390625
        %953 = vmatprep.subr.mxu0 0.0
        %954 = vmatpush1.msra.mxu0 0.00390625
        %955 = vmatprep.subr.mxu0 0.0
        %956 = vmatpush1.msra.mxu0 0.00390625
        %957 = vmatprep.subr.mxu0 0.0
        %958 = vmatpush1.msra.mxu0 0.00390625
        %959 = vmatprep.subr.mxu0 0.0
        %960 = vmatpush1.msra.mxu0 0.00390625
        %961 = vmatprep.subr.mxu0 0.0
        %962 = vmatpush1.msra.mxu0 0.00390625
        %963 = vmatprep.subr.mxu0 0.0
        %964 = vmatpush1.msra.mxu0 0.00390625
        %965 = vmatprep.subr.mxu0 0.0
        %966 = vmatpush1.msra.mxu0 0.00390625
        %967 = vmatprep.subr.mxu0 0.0
        %968 = vmatpush1.msra.mxu0 0.00390625
        %969 = vmatprep.subr.mxu0 0.0
        %970 = vmatpush1.msra.mxu0 0.00390625
        %971 = vmatprep.subr.mxu0 0.0
        %972 = vmatpush1.msra.mxu0 0.00390625
        %973 = vmatprep.subr.mxu0 0.0
        %974 = vmatpush1.msra.mxu0 0.00390625
        %975 = vmatprep.subr.mxu0 0.0
        %976 = vmatpush1.msra.mxu0 0.00390625
        %977 = vmatprep.subr.mxu0 0.0
        %978 = vmatpush1.msra.mxu0 0.00390625
        %979 = vmatprep.subr.mxu0 0.0
        %980 = vmatpush1.msra.mxu0 0.00390625
        %981 = vmatprep.subr.mxu0 0.0
        %982 = vmatpush1.msra.mxu0 0.00390625
        %983 = vmatprep.subr.mxu0 0.0
        %984 = vmatpush2.msra.mxu0 0.00390625
        %985 = vmatprep.subr.mxu0 0.0
        %986 = vmatpush2.msra.mxu0 0.00390625
        %987 = vmatprep.subr.mxu0 0.0
        %988 = vmatpush2.msra.mxu0 0.00390625
        %989 = vmatprep.subr.mxu0 0.0
        %990 = vmatpush2.msra.mxu0 0.00390625
        %991 = vmatprep.subr.mxu0 0.0
        %992 = vmatpush2.msra.mxu0 0.00390625
        %993 = vmatprep.subr.mxu0 0.0
        %994 = vmatpush2.msra.mxu0 0.00390625
        %995 = vmatprep.subr.mxu0 0.0
        %996 = vmatpush2.msra.mxu0 0.00390625
        %997 = vmatprep.subr.mxu0 0.0
        %998 = vmatpush2.msra.mxu0 0.00390625
        %999 = vmatprep.subr.mxu0 0.0
        %1000 = vmatpush2.msra.mxu0 0.00390625
        %1001 = vmatprep.subr.mxu0 0.0
        %1002 = vmatpush2.msra.mxu0 0.00390625
        %1003 = vmatprep.subr.mxu0 0.0
        %1004 = vmatpush2.msra.mxu0 0.00390625
        %1005 = vmatprep.subr.mxu0 0.0
        %1006 = vmatpush2.msra.mxu0 0.00390625
        %1007 = vmatprep.subr.mxu0 0.0
        %1008 = vmatpush2.msra.mxu0 0.00390625
        %1009 = vmatprep.subr.mxu0 0.0
        %1010 = vmatpush2.msra.mxu0 0.00390625
        %1011 = vmatprep.subr.mxu0 0.0
        %1012 = vmatpush2.msra.mxu0 0.00390625
        %1013 = vmatprep.subr.mxu0 0.0
        %1014 = vmatpush2.msra.mxu0 0.00390625
        %1015 = vmatprep.mubr.f32.mxu0 %v944
        %1016 = vmatmul.mubr.f32.gmra.mxu0 %v943
        %v1017 = vpop.f32.mrf.mxu0
        %v1018 = vadd.f32 0.0, %v1017
        %v1019 = vpop.f32.mrf.mxu0
        %1020 = vmatprep.mubr.f32.mxu0 %v946
        %1021 = vmatmul.mubr.f32.gmra.mxu0 %v945
        %v1022 = vpop.f32.mrf.mxu0
        %v1023 = vadd.f32 0.0, %v1022
        %v1024 = vpop.f32.mrf.mxu0
        %1025 = vmatprep.mubr.f32.mxu0 %v948
        %1026 = vmatmul.mubr.f32.gmra.mxu0 %v947
        %v1027 = vpop.f32.mrf.mxu0
        %v1028 = vadd.f32 0.0, %v1027
        %v1029 = vpop.f32.mrf.mxu0
        %1030 = vmatprep.mubr.f32.mxu0 %v950
        %1031 = vmatmul.mubr.f32.gmra.mxu0 %v949
        %v1032 = vpop.f32.mrf.mxu0
        %v1033 = vadd.f32 0.0, %v1032
        %v1034 = vpop.f32.mrf.mxu0
        %1035 = vdwg.mxu0
        %v1036 = vmul.f32 %v925, %v925
        %v1037 = vmul.f32 %v930, %v930
        %v1038 = vmul.f32 %v935, %v935
        %v1039 = vmul.f32 %v940, %v940
        %v1040 = vsub.f32 %v1018, %v1036
        %v1041 = vsub.f32 %v1023, %v1037
        %v1042 = vsub.f32 %v1028, %v1038
        %v1043 = vsub.f32 %v1033, %v1039
        %1045 = vset.pattern.permute.xlu0 0
        %1046 = vperm.xlu0 %1045, %v925
        %v1047 = vpop.permute.xlu0 %1046
        %1050 = vset.pattern.permute.xlu0 0
        %1051 = vperm.xlu0 %1050, %v930
        %v1052 = vpop.permute.xlu0 %1051
        %1055 = vset.pattern.permute.xlu0 0
        %1056 = vperm.xlu0 %1055, %v935
        %v1057 = vpop.permute.xlu0 %1056
        %1060 = vset.pattern.permute.xlu0 0
        %1061 = vperm.xlu0 %1060, %v940
        %v1062 = vpop.permute.xlu0 %1061
        %v1064 = vsub.f32 %v850, %v1047
        %v1065 = vsub.f32 %v851, %v1047
        %v1066 = vsub.f32 %v852, %v1052
        %v1067 = vsub.f32 %v853, %v1052
        %v1068 = vsub.f32 %v854, %v1057
        %v1069 = vsub.f32 %v855, %v1057
        %v1070 = vsub.f32 %v856, %v1062
        %v1071 = vsub.f32 %v857, %v1062
        %v1072 = vadd.f32 %v1040, 1e-05
        %v1073 = vadd.f32 %v1041, 1e-05
        %v1074 = vadd.f32 %v1042, 1e-05
        %v1075 = vadd.f32 %v1043, 1e-05
        %v1076 = vrsqrt.pop %v1072
        %v1077 = vrsqrt.pop %v1073
        %v1078 = vrsqrt.pop %v1074
        %v1079 = vrsqrt.pop %v1075
        %1081 = vset.pattern.permute.xlu0 0
        %1082 = vperm.xlu0 %1081, %v1076
        %v1083 = vpop.permute.xlu0 %1082
        %1086 = vset.pattern.permute.xlu0 0
        %1087 = vperm.xlu0 %1086, %v1077
        %v1088 = vpop.permute.xlu0 %1087
        %1091 = vset.pattern.permute.xlu0 0
        %1092 = vperm.xlu0 %1091, %v1078
        %v1093 = vpop.permute.xlu0 %1092
        %1096 = vset.pattern.permute.xlu0 0
        %1097 = vperm.xlu0 %1096, %v1079
        %v1098 = vpop.permute.xlu0 %1097
        %v1100 = vmul.f32 %v1064, %v1083
        %v1101 = vmul.f32 %v1065, %v1083
        %v1102 = vmul.f32 %v1066, %v1088
        %v1103 = vmul.f32 %v1067, %v1088
        %v1104 = vmul.f32 %v1068, %v1093
        %v1105 = vmul.f32 %v1069, %v1093
        %v1106 = vmul.f32 %v1070, %v1098
        %v1107 = vmul.f32 %v1071, %v1098
        %1108 = vset.pattern.permute.xlu0 2
        %1109 = vperm.xlu0 %1108, %v364
        %v1110 = vpop.permute.xlu0 %1109
        %1112 = vset.pattern.permute.xlu0 2
        %1113 = vperm.xlu0 %1112, %v365
        %v1114 = vpop.permute.xlu0 %1113
        %1116 = vset.pattern.permute.xlu0 2
        %1117 = vperm.xlu0 %1116, %v366
        %v1118 = vpop.permute.xlu0 %1117
        %1120 = vset.pattern.permute.xlu0 2
        %1121 = vperm.xlu0 %1120, %v367
        %v1122 = vpop.permute.xlu0 %1121
        %v1124 = vmul.f32 %v1100, %v1110
        %v1125 = vmul.f32 %v1101, %v1110
        %v1126 = vmul.f32 %v1102, %v1114
        %v1127 = vmul.f32 %v1103, %v1114
        %v1128 = vmul.f32 %v1104, %v1118
        %v1129 = vmul.f32 %v1105, %v1118
        %v1130 = vmul.f32 %v1106, %v1122
        %v1131 = vmul.f32 %v1107, %v1122
        %1132 = vset.pattern.permute.xlu0 3
        %1133 = vperm.xlu0 %1132, %v364
        %v1134 = vpop.permute.xlu0 %1133
        %1136 = vset.pattern.permute.xlu0 3
        %1137 = vperm.xlu0 %1136, %v365
        %v1138 = vpop.permute.xlu0 %1137
        %1140 = vset.pattern.permute.xlu0 3
        %1141 = vperm.xlu0 %1140, %v366
        %v1142 = vpop.permute.xlu0 %1141
        %1144 = vset.pattern.permute.xlu0 3
        %1145 = vperm.xlu0 %1144, %v367
        %v1146 = vpop.permute.xlu0 %1145
        %v1148 = vadd.f32 %v1124, %v1134
        %v1149 = vadd.f32 %v1125, %v1134
        %v1150 = vadd.f32 %v1126, %v1138
        %v1151 = vadd.f32 %v1127, %v1138
        %v1152 = vadd.f32 %v1128, %v1142
        %v1153 = vadd.f32 %v1129, %v1142
        %v1154 = vadd.f32 %v1130, %v1146
        %v1155 = vadd.f32 %v1131, %v1146
        %1156 = vrot.lane.b32.xlu0 %v352, 17
        %v1157 = vpop.permute.xlu0 %1156
        %1158 = vrot.lane.b32.xlu0 %v354, 17
        %v1159 = vpop.permute.xlu0 %1158
        %1160 = vrot.lane.b32.xlu0 %v356, 17
        %v1161 = vpop.permute.xlu0 %1160
        %1162 = vrot.lane.b32.xlu0 %v358, 17
        %v1163 = vpop.permute.xlu0 %1162
        %1164 = vrot.lane.b32.xlu0 %v353, 17
        %v1165 = vpop.permute.xlu0 %1164
        %1166 = vrot.lane.b32.xlu0 %v355, 17
        %v1167 = vpop.permute.xlu0 %1166
        %1168 = vrot.lane.b32.xlu0 %v357, 17
        %v1169 = vpop.permute.xlu0 %1168
        %1170 = vrot.lane.b32.xlu0 %v359, 17
        %v1171 = vpop.permute.xlu0 %1170
        %v1172 = vlaneseq
        %v1173 = vand.u32 %v1172, 127
        %vm1174 = vcmp.lt.s32.totalorder %v1173, 17
        %v1175 = vsel %vm1174, %v1157, %v1165
        %v1176 = vsel %vm1174, %v1159, %v1167
        %v1177 = vsel %vm1174, %v1161, %v1169
        %v1178 = vsel %vm1174, %v1163, %v1171
        %v1179 = vsel %vm1174, %v1165, %v1157
        %v1180 = vsel %vm1174, %v1167, %v1159
        %v1181 = vsel %vm1174, %v1169, %v1161
        %v1182 = vsel %vm1174, %v1171, %v1163
        %v1183 = vlaneseq
        %v1184 = vshrl.u32 %v1183, 7
        %v1185 = vsub.s32 0, %v1184
        %v1186 = vrot.slane %v360, %v1185
        %v1187 = vlaneseq
        %v1188 = vshrl.u32 %v1187, 7
        %v1189 = vsub.s32 0, %v1188
        %v1190 = vrot.slane %v361, %v1189
        %v1191 = vmul.f32 %v1179, %v1186
        %v1192 = vmul.f32 %v1175, %v1190
        %v1193 = vmul.f32 %v1180, %v1186
        %v1194 = vmul.f32 %v1176, %v1190
        %v1195 = vmul.f32 %v1181, %v1186
        %v1196 = vmul.f32 %v1177, %v1190
        %v1197 = vmul.f32 %v1182, %v1186
        %v1198 = vmul.f32 %v1178, %v1190
        %1199 = vrot.lane.b32.xlu0 %v352, 16
        %v1200 = vpop.permute.xlu0 %1199
        %1201 = vrot.lane.b32.xlu0 %v354, 16
        %v1202 = vpop.permute.xlu0 %1201
        %1203 = vrot.lane.b32.xlu0 %v356, 16
        %v1204 = vpop.permute.xlu0 %1203
        %1205 = vrot.lane.b32.xlu0 %v358, 16
        %v1206 = vpop.permute.xlu0 %1205
        %1207 = vrot.lane.b32.xlu0 %v353, 16
        %v1208 = vpop.permute.xlu0 %1207
        %1209 = vrot.lane.b32.xlu0 %v355, 16
        %v1210 = vpop.permute.xlu0 %1209
        %1211 = vrot.lane.b32.xlu0 %v357, 16
        %v1212 = vpop.permute.xlu0 %1211
        %1213 = vrot.lane.b32.xlu0 %v359, 16
        %v1214 = vpop.permute.xlu0 %1213
        %vm1215 = vcmp.lt.s32.totalorder %v1173, 16
        %v1216 = vsel %vm1215, %v1200, %v1208
        %v1217 = vsel %vm1215, %v1202, %v1210
        %v1218 = vsel %vm1215, %v1204, %v1212
        %v1219 = vsel %vm1215, %v1206, %v1214
        %v1220 = vsel %vm1215, %v1208, %v1200
        %v1221 = vsel %vm1215, %v1210, %v1202
        %v1222 = vsel %vm1215, %v1212, %v1204
        %v1223 = vsel %vm1215, %v1214, %v1206
        %v1224 = vlaneseq
        %v1225 = vshrl.u32 %v1224, 7
        %v1226 = vsub.s32 1, %v1225
        %v1227 = vrot.slane %v360, %v1226
        %v1228 = vlaneseq
        %v1229 = vshrl.u32 %v1228, 7
        %v1230 = vsub.s32 1, %v1229
        %v1231 = vrot.slane %v361, %v1230
        %v1232 = vmul.f32 %v1220, %v1227
        %v1233 = vmul.f32 %v1216, %v1231
        %v1234 = vmul.f32 %v1221, %v1227
        %v1235 = vmul.f32 %v1217, %v1231
        %v1236 = vmul.f32 %v1222, %v1227
        %v1237 = vmul.f32 %v1218, %v1231
        %v1238 = vmul.f32 %v1223, %v1227
        %v1239 = vmul.f32 %v1219, %v1231
        %1240 = vrot.lane.b32.xlu0 %v352, 15
        %v1241 = vpop.permute.xlu0 %1240
        %1242 = vrot.lane.b32.xlu0 %v354, 15
        %v1243 = vpop.permute.xlu0 %1242
        %1244 = vrot.lane.b32.xlu0 %v356, 15
        %v1245 = vpop.permute.xlu0 %1244
        %1246 = vrot.lane.b32.xlu0 %v358, 15
        %v1247 = vpop.permute.xlu0 %1246
        %1248 = vrot.lane.b32.xlu0 %v353, 15
        %v1249 = vpop.permute.xlu0 %1248
        %1250 = vrot.lane.b32.xlu0 %v355, 15
        %v1251 = vpop.permute.xlu0 %1250
        %1252 = vrot.lane.b32.xlu0 %v357, 15
        %v1253 = vpop.permute.xlu0 %1252
        %1254 = vrot.lane.b32.xlu0 %v359, 15
        %v1255 = vpop.permute.xlu0 %1254
        %vm1256 = vcmp.lt.s32.totalorder %v1173, 15
        %v1257 = vsel %vm1256, %v1241, %v1249
        %v1258 = vsel %vm1256, %v1243, %v1251
        %v1259 = vsel %vm1256, %v1245, %v1253
        %v1260 = vsel %vm1256, %v1247, %v1255
        %v1261 = vsel %vm1256, %v1249, %v1241
        %v1262 = vsel %vm1256, %v1251, %v1243
        %v1263 = vsel %vm1256, %v1253, %v1245
        %v1264 = vsel %vm1256, %v1255, %v1247
        %v1265 = vlaneseq
        %v1266 = vshrl.u32 %v1265, 7
        %v1267 = vsub.s32 2, %v1266
        %v1268 = vrot.slane %v360, %v1267
        %v1269 = vlaneseq
        %v1270 = vshrl.u32 %v1269, 7
        %v1271 = vsub.s32 2, %v1270
        %v1272 = vrot.slane %v361, %v1271
        %v1273 = vmul.f32 %v1261, %v1268
        %v1274 = vmul.f32 %v1257, %v1272
        %v1275 = vmul.f32 %v1262, %v1268
        %v1276 = vmul.f32 %v1258, %v1272
        %v1277 = vmul.f32 %v1263, %v1268
        %v1278 = vmul.f32 %v1259, %v1272
        %v1279 = vmul.f32 %v1264, %v1268
        %v1280 = vmul.f32 %v1260, %v1272
        %1281 = vrot.lane.b32.xlu0 %v352, 1
        %v1282 = vpop.permute.xlu0 %1281
        %1283 = vrot.lane.b32.xlu0 %v354, 1
        %v1284 = vpop.permute.xlu0 %1283
        %1285 = vrot.lane.b32.xlu0 %v356, 1
        %v1286 = vpop.permute.xlu0 %1285
        %1287 = vrot.lane.b32.xlu0 %v358, 1
        %v1288 = vpop.permute.xlu0 %1287
        %1289 = vrot.lane.b32.xlu0 %v353, 1
        %v1290 = vpop.permute.xlu0 %1289
        %1291 = vrot.lane.b32.xlu0 %v355, 1
        %v1292 = vpop.permute.xlu0 %1291
        %1293 = vrot.lane.b32.xlu0 %v357, 1
        %v1294 = vpop.permute.xlu0 %1293
        %1295 = vrot.lane.b32.xlu0 %v359, 1
        %v1296 = vpop.permute.xlu0 %1295
        %vm1297 = vcmp.lt.s32.totalorder %v1173, 1
        %v1298 = vsel %vm1297, %v1282, %v1290
        %v1299 = vsel %vm1297, %v1284, %v1292
        %v1300 = vsel %vm1297, %v1286, %v1294
        %v1301 = vsel %vm1297, %v1288, %v1296
        %v1302 = vsel %vm1297, %v1290, %v1282
        %v1303 = vsel %vm1297, %v1292, %v1284
        %v1304 = vsel %vm1297, %v1294, %v1286
        %v1305 = vsel %vm1297, %v1296, %v1288
        %v1306 = vlaneseq
        %v1307 = vshrl.u32 %v1306, 7
        %v1308 = vsub.s32 3, %v1307
        %v1309 = vrot.slane %v360, %v1308
        %v1310 = vlaneseq
        %v1311 = vshrl.u32 %v1310, 7
        %v1312 = vsub.s32 3, %v1311
        %v1313 = vrot.slane %v361, %v1312
        %v1314 = vmul.f32 %v1302, %v1309
        %v1315 = vmul.f32 %v1298, %v1313
        %v1316 = vmul.f32 %v1303, %v1309
        %v1317 = vmul.f32 %v1299, %v1313
        %v1318 = vmul.f32 %v1304, %v1309
        %v1319 = vmul.f32 %v1300, %v1313
        %v1320 = vmul.f32 %v1305, %v1309
        %v1321 = vmul.f32 %v1301, %v1313
        %v1322 = vlaneseq
        %v1323 = vshrl.u32 %v1322, 7
        %v1324 = vsub.s32 4, %v1323
        %v1325 = vrot.slane %v360, %v1324
        %v1326 = vlaneseq
        %v1327 = vshrl.u32 %v1326, 7
        %v1328 = vsub.s32 4, %v1327
        %v1329 = vrot.slane %v361, %v1328
        %v1330 = vmul.f32 %v352, %v1325
        %v1331 = vmul.f32 %v353, %v1329
        %v1332 = vmul.f32 %v354, %v1325
        %v1333 = vmul.f32 %v355, %v1329
        %v1334 = vmul.f32 %v356, %v1325
        %v1335 = vmul.f32 %v357, %v1329
        %v1336 = vmul.f32 %v358, %v1325
        %v1337 = vmul.f32 %v359, %v1329
        %1338 = vrot.lane.b32.xlu0 %v352, 127
        %v1339 = vpop.permute.xlu0 %1338
        %1340 = vrot.lane.b32.xlu0 %v354, 127
        %v1341 = vpop.permute.xlu0 %1340
        %1342 = vrot.lane.b32.xlu0 %v356, 127
        %v1343 = vpop.permute.xlu0 %1342
        %1344 = vrot.lane.b32.xlu0 %v358, 127
        %v1345 = vpop.permute.xlu0 %1344
        %1346 = vrot.lane.b32.xlu0 %v353, 127
        %v1347 = vpop.permute.xlu0 %1346
        %1348 = vrot.lane.b32.xlu0 %v355, 127
        %v1349 = vpop.permute.xlu0 %1348
        %1350 = vrot.lane.b32.xlu0 %v357, 127
        %v1351 = vpop.permute.xlu0 %1350
        %1352 = vrot.lane.b32.xlu0 %v359, 127
        %v1353 = vpop.permute.xlu0 %1352
        %vm1354 = vcmp.lt.s32.totalorder %v1173, 127
        %v1355 = vsel %vm1354, %v1339, %v1347
        %v1356 = vsel %vm1354, %v1341, %v1349
        %v1357 = vsel %vm1354, %v1343, %v1351
        %v1358 = vsel %vm1354, %v1345, %v1353
        %v1359 = vsel %vm1354, %v1347, %v1339
        %v1360 = vsel %vm1354, %v1349, %v1341
        %v1361 = vsel %vm1354, %v1351, %v1343
        %v1362 = vsel %vm1354, %v1353, %v1345
        %v1363 = vlaneseq
        %v1364 = vshrl.u32 %v1363, 7
        %v1365 = vsub.s32 5, %v1364
        %v1366 = vrot.slane %v360, %v1365
        %v1367 = vlaneseq
        %v1368 = vshrl.u32 %v1367, 7
        %v1369 = vsub.s32 5, %v1368
        %v1370 = vrot.slane %v361, %v1369
        %v1371 = vmul.f32 %v1355, %v1366
        %v1372 = vmul.f32 %v1359, %v1370
        %v1373 = vmul.f32 %v1356, %v1366
        %v1374 = vmul.f32 %v1360, %v1370
        %v1375 = vmul.f32 %v1357, %v1366
        %v1376 = vmul.f32 %v1361, %v1370
        %v1377 = vmul.f32 %v1358, %v1366
        %v1378 = vmul.f32 %v1362, %v1370
        %1379 = vrot.lane.b32.xlu0 %v352, 113
        %v1380 = vpop.permute.xlu0 %1379
        %1381 = vrot.lane.b32.xlu0 %v354, 113
        %v1382 = vpop.permute.xlu0 %1381
        %1383 = vrot.lane.b32.xlu0 %v356, 113
        %v1384 = vpop.permute.xlu0 %1383
        %1385 = vrot.lane.b32.xlu0 %v358, 113
        %v1386 = vpop.permute.xlu0 %1385
        %1387 = vrot.lane.b32.xlu0 %v353, 113
        %v1388 = vpop.permute.xlu0 %1387
        %1389 = vrot.lane.b32.xlu0 %v355, 113
        %v1390 = vpop.permute.xlu0 %1389
        %1391 = vrot.lane.b32.xlu0 %v357, 113
        %v1392 = vpop.permute.xlu0 %1391
        %1393 = vrot.lane.b32.xlu0 %v359, 113
        %v1394 = vpop.permute.xlu0 %1393
        %vm1395 = vcmp.lt.s32.totalorder %v1173, 113
        %v1396 = vsel %vm1395, %v1380, %v1388
        %v1397 = vsel %vm1395, %v1382, %v1390
        %v1398 = vsel %vm1395, %v1384, %v1392
        %v1399 = vsel %vm1395, %v1386, %v1394
        %v1400 = vsel %vm1395, %v1388, %v1380
        %v1401 = vsel %vm1395, %v1390, %v1382
        %v1402 = vsel %vm1395, %v1392, %v1384
        %v1403 = vsel %vm1395, %v1394, %v1386
        %v1404 = vlaneseq
        %v1405 = vshrl.u32 %v1404, 7
        %v1406 = vsub.s32 6, %v1405
        %v1407 = vrot.slane %v360, %v1406
        %v1408 = vlaneseq
        %v1409 = vshrl.u32 %v1408, 7
        %v1410 = vsub.s32 6, %v1409
        %v1411 = vrot.slane %v361, %v1410
        %v1412 = vmul.f32 %v1396, %v1407
        %v1413 = vmul.f32 %v1400, %v1411
        %v1414 = vmul.f32 %v1397, %v1407
        %v1415 = vmul.f32 %v1401, %v1411
        %v1416 = vmul.f32 %v1398, %v1407
        %v1417 = vmul.f32 %v1402, %v1411
        %v1418 = vmul.f32 %v1399, %v1407
        %v1419 = vmul.f32 %v1403, %v1411
        %1420 = vrot.lane.b32.xlu0 %v352, 112
        %v1421 = vpop.permute.xlu0 %1420
        %1422 = vrot.lane.b32.xlu0 %v354, 112
        %v1423 = vpop.permute.xlu0 %1422
        %1424 = vrot.lane.b32.xlu0 %v356, 112
        %v1425 = vpop.permute.xlu0 %1424
        %1426 = vrot.lane.b32.xlu0 %v358, 112
        %v1427 = vpop.permute.xlu0 %1426
        %1428 = vrot.lane.b32.xlu0 %v353, 112
        %v1429 = vpop.permute.xlu0 %1428
        %1430 = vrot.lane.b32.xlu0 %v355, 112
        %v1431 = vpop.permute.xlu0 %1430
        %1432 = vrot.lane.b32.xlu0 %v357, 112
        %v1433 = vpop.permute.xlu0 %1432
        %1434 = vrot.lane.b32.xlu0 %v359, 112
        %v1435 = vpop.permute.xlu0 %1434
        %vm1436 = vcmp.lt.s32.totalorder %v1173, 112
        %v1437 = vsel %vm1436, %v1421, %v1429
        %v1438 = vsel %vm1436, %v1423, %v1431
        %v1439 = vsel %vm1436, %v1425, %v1433
        %v1440 = vsel %vm1436, %v1427, %v1435
        %v1441 = vsel %vm1436, %v1429, %v1421
        %v1442 = vsel %vm1436, %v1431, %v1423
        %v1443 = vsel %vm1436, %v1433, %v1425
        %v1444 = vsel %vm1436, %v1435, %v1427
        %v1445 = vlaneseq
        %v1446 = vshrl.u32 %v1445, 7
        %v1447 = vsub.s32 7, %v1446
        %v1448 = vrot.slane %v360, %v1447
        %v1449 = vlaneseq
        %v1450 = vshrl.u32 %v1449, 7
        %v1451 = vsub.s32 7, %v1450
        %v1452 = vrot.slane %v361, %v1451
        %v1453 = vmul.f32 %v1437, %v1448
        %v1454 = vmul.f32 %v1441, %v1452
        %v1455 = vmul.f32 %v1438, %v1448
        %v1456 = vmul.f32 %v1442, %v1452
        %v1457 = vmul.f32 %v1439, %v1448
        %v1458 = vmul.f32 %v1443, %v1452
        %v1459 = vmul.f32 %v1440, %v1448
        %v1460 = vmul.f32 %v1444, %v1452
        %1461 = vrot.lane.b32.xlu0 %v352, 111
        %v1462 = vpop.permute.xlu0 %1461
        %1463 = vrot.lane.b32.xlu0 %v354, 111
        %v1464 = vpop.permute.xlu0 %1463
        %1465 = vrot.lane.b32.xlu0 %v356, 111
        %v1466 = vpop.permute.xlu0 %1465
        %1467 = vrot.lane.b32.xlu0 %v358, 111
        %v1468 = vpop.permute.xlu0 %1467
        %1469 = vrot.lane.b32.xlu0 %v353, 111
        %v1470 = vpop.permute.xlu0 %1469
        %1471 = vrot.lane.b32.xlu0 %v355, 111
        %v1472 = vpop.permute.xlu0 %1471
        %1473 = vrot.lane.b32.xlu0 %v357, 111
        %v1474 = vpop.permute.xlu0 %1473
        %1475 = vrot.lane.b32.xlu0 %v359, 111
        %v1476 = vpop.permute.xlu0 %1475
        %vm1477 = vcmp.lt.s32.totalorder %v1173, 111
        %v1478 = vsel %vm1477, %v1462, %v1470
        %v1479 = vsel %vm1477, %v1464, %v1472
        %v1480 = vsel %vm1477, %v1466, %v1474
        %v1481 = vsel %vm1477, %v1468, %v1476
        %v1482 = vsel %vm1477, %v1470, %v1462
        %v1483 = vsel %vm1477, %v1472, %v1464
        %v1484 = vsel %vm1477, %v1474, %v1466
        %v1485 = vsel %vm1477, %v1476, %v1468
        %v1486 = vlaneseq
        %v1487 = vshrl.u32 %v1486, 7
        %v1488 = vsub.s32 0, %v1487
        %v1489 = vrot.slane %v362, %v1488
        %v1490 = vlaneseq
        %v1491 = vshrl.u32 %v1490, 7
        %v1492 = vsub.s32 0, %v1491
        %v1493 = vrot.slane %v363, %v1492
        %v1494 = vmul.f32 %v1478, %v1489
        %v1495 = vmul.f32 %v1482, %v1493
        %v1496 = vmul.f32 %v1479, %v1489
        %v1497 = vmul.f32 %v1483, %v1493
        %v1498 = vmul.f32 %v1480, %v1489
        %v1499 = vmul.f32 %v1484, %v1493
        %v1500 = vmul.f32 %v1481, %v1489
        %v1501 = vmul.f32 %v1485, %v1493
        %v1502 = vld [vmem:[%s5] sm:$0xff]
        %v1503 = vld [vmem:[%s5 + $0x8] sm:$0xff]
        %v1504 = vld [vmem:[%s5 + $0x10] sm:$0xff]
        %v1505 = vld [vmem:[%s5 + $0x18] sm:$0xff]
        %v1506 = vld [vmem:[%s5 + $0x20] sm:$0xff]
        %v1507 = vld [vmem:[%s5 + $0x28] sm:$0xff]
        %v1508 = vld [vmem:[%s5 + $0x30] sm:$0xff]
        %v1509 = vld [vmem:[%s5 + $0x38] sm:$0xff]
        %v1510 = vld [vmem:[%s5 + $0x40] sm:$0xff]
        %v1511 = vld [vmem:[%s5 + $0x48] sm:$0xff]
        %v1512 = vld [vmem:[%s5 + $0x50] sm:$0xff]
        %v1513 = vld [vmem:[%s5 + $0x58] sm:$0xff]
        %1514 = vset.pattern.permute.xlu0 1
        %1515 = vperm.xlu0 %1514, %v364
        %v1516 = vpop.permute.xlu0 %1515
        %1518 = vset.pattern.permute.xlu0 1
        %1519 = vperm.xlu0 %1518, %v365
        %v1520 = vpop.permute.xlu0 %1519
        %1522 = vset.pattern.permute.xlu0 1
        %1523 = vperm.xlu0 %1522, %v366
        %v1524 = vpop.permute.xlu0 %1523
        %1526 = vset.pattern.permute.xlu0 1
        %1527 = vperm.xlu0 %1526, %v367
        %v1528 = vpop.permute.xlu0 %1527
        %v1531 = vsel %vm514, %v1504, 0
        %v1534 = vsel %vm514, %v1507, 0
        %v1537 = vsel %vm514, %v1510, 0
        %v1540 = vsel %vm514, %v1513, 0
        %1542 = vmatprep.subr.mxu0 %v1321
        %1543 = vmatpush1.msra.mxu0 %v1320
        %1544 = vmatprep.subr.mxu0 %v1319
        %1545 = vmatpush1.msra.mxu0 %v1318
        %1546 = vmatprep.subr.mxu0 %v1317
        %1547 = vmatpush1.msra.mxu0 %v1316
        %1548 = vmatprep.subr.mxu0 %v1315
        %1549 = vmatpush1.msra.mxu0 %v1314
        %1550 = vmatprep.subr.mxu0 %v1280
        %1551 = vmatpush1.msra.mxu0 %v1279
        %1552 = vmatprep.subr.mxu0 %v1278
        %1553 = vmatpush1.msra.mxu0 %v1277
        %1554 = vmatprep.subr.mxu0 %v1276
        %1555 = vmatpush1.msra.mxu0 %v1275
        %1556 = vmatprep.subr.mxu0 %v1274
        %1557 = vmatpush1.msra.mxu0 %v1273
        %1558 = vmatprep.subr.mxu0 %v1239
        %1559 = vmatpush1.msra.mxu0 %v1238
        %1560 = vmatprep.subr.mxu0 %v1237
        %1561 = vmatpush1.msra.mxu0 %v1236
        %1562 = vmatprep.subr.mxu0 %v1235
        %1563 = vmatpush1.msra.mxu0 %v1234
        %1564 = vmatprep.subr.mxu0 %v1233
        %1565 = vmatpush1.msra.mxu0 %v1232
        %1566 = vmatprep.subr.mxu0 %v1198
        %1567 = vmatpush1.msra.mxu0 %v1197
        %1568 = vmatprep.subr.mxu0 %v1196
        %1569 = vmatpush1.msra.mxu0 %v1195
        %1570 = vmatprep.subr.mxu0 %v1194
        %1571 = vmatpush1.msra.mxu0 %v1193
        %1572 = vmatprep.subr.mxu0 %v1192
        %1573 = vmatpush1.msra.mxu0 %v1191
        %1574 = vmatprep.subr.mxu0 %v1460
        %1575 = vmatpush2.msra.mxu0 %v1459
        %1576 = vmatprep.subr.mxu0 %v1458
        %1577 = vmatpush2.msra.mxu0 %v1457
        %1578 = vmatprep.subr.mxu0 %v1456
        %1579 = vmatpush2.msra.mxu0 %v1455
        %1580 = vmatprep.subr.mxu0 %v1454
        %1581 = vmatpush2.msra.mxu0 %v1453
        %1582 = vmatprep.subr.mxu0 %v1419
        %1583 = vmatpush2.msra.mxu0 %v1418
        %1584 = vmatprep.subr.mxu0 %v1417
        %1585 = vmatpush2.msra.mxu0 %v1416
        %1586 = vmatprep.subr.mxu0 %v1415
        %1587 = vmatpush2.msra.mxu0 %v1414
        %1588 = vmatprep.subr.mxu0 %v1413
        %1589 = vmatpush2.msra.mxu0 %v1412
        %1590 = vmatprep.subr.mxu0 %v1378
        %1591 = vmatpush2.msra.mxu0 %v1377
        %1592 = vmatprep.subr.mxu0 %v1376
        %1593 = vmatpush2.msra.mxu0 %v1375
        %1594 = vmatprep.subr.mxu0 %v1374
        %1595 = vmatpush2.msra.mxu0 %v1373
        %1596 = vmatprep.subr.mxu0 %v1372
        %1597 = vmatpush2.msra.mxu0 %v1371
        %1598 = vmatprep.subr.mxu0 %v1337
        %1599 = vmatpush2.msra.mxu0 %v1336
        %1600 = vmatprep.subr.mxu0 %v1335
        %1601 = vmatpush2.msra.mxu0 %v1334
        %1602 = vmatprep.subr.mxu0 %v1333
        %1603 = vmatpush2.msra.mxu0 %v1332
        %1604 = vmatprep.subr.mxu0 %v1331
        %1605 = vmatpush2.msra.mxu0 %v1330
        %1606 = vmatprep.mubr.f32.mxu0 %v1503
        %1607 = vmatmul.mubr.f32.gmra.mxu0 %v1502
        %v1608 = vpop.f32.mrf.mxu0
        %v1609 = vadd.f32 %v1516, %v1608
        %v1610 = vpop.f32.mrf.mxu0
        %v1611 = vadd.f32 %v1516, %v1610
        %1612 = vmatprep.mubr.f32.mxu0 %v1506
        %1613 = vmatmul.mubr.f32.gmra.mxu0 %v1505
        %v1614 = vpop.f32.mrf.mxu0
        %v1615 = vadd.f32 %v1520, %v1614
        %v1616 = vpop.f32.mrf.mxu0
        %v1617 = vadd.f32 %v1520, %v1616
        %1618 = vmatprep.mubr.f32.mxu0 %v1509
        %1619 = vmatmul.mubr.f32.gmra.mxu0 %v1508
        %v1620 = vpop.f32.mrf.mxu0
        %v1621 = vadd.f32 %v1524, %v1620
        %v1622 = vpop.f32.mrf.mxu0
        %v1623 = vadd.f32 %v1524, %v1622
        %1624 = vmatprep.mubr.f32.mxu0 %v1512
        %1625 = vmatmul.mubr.f32.gmra.mxu0 %v1511
        %v1626 = vpop.f32.mrf.mxu0
        %v1627 = vadd.f32 %v1528, %v1626
        %v1628 = vpop.f32.mrf.mxu0
        %v1629 = vadd.f32 %v1528, %v1628
        %1630 = vdwg.mxu0
        %1631 = vmatprep.subr.mxu0 0.0
        %1632 = vmatpush1.msra.mxu0 0.0
        %1633 = vmatprep.subr.mxu0 0.0
        %1634 = vmatpush1.msra.mxu0 0.0
        %1635 = vmatprep.subr.mxu0 0.0
        %1636 = vmatpush1.msra.mxu0 0.0
        %1637 = vmatprep.subr.mxu0 0.0
        %1638 = vmatpush1.msra.mxu0 0.0
        %1639 = vmatprep.subr.mxu0 0.0
        %1640 = vmatpush1.msra.mxu0 0.0
        %1641 = vmatprep.subr.mxu0 0.0
        %1642 = vmatpush1.msra.mxu0 0.0
        %1643 = vmatprep.subr.mxu0 0.0
        %1644 = vmatpush1.msra.mxu0 0.0
        %1645 = vmatprep.subr.mxu0 0.0
        %1646 = vmatpush1.msra.mxu0 0.0
        %1647 = vmatprep.subr.mxu0 0.0
        %1648 = vmatpush1.msra.mxu0 0.0
        %1649 = vmatprep.subr.mxu0 0.0
        %1650 = vmatpush1.msra.mxu0 0.0
        %1651 = vmatprep.subr.mxu0 0.0
        %1652 = vmatpush1.msra.mxu0 0.0
        %1653 = vmatprep.subr.mxu0 0.0
        %1654 = vmatpush1.msra.mxu0 0.0
        %1655 = vmatprep.subr.mxu0 %v1501
        %1656 = vmatpush1.msra.mxu0 %v1500
        %1657 = vmatprep.subr.mxu0 %v1499
        %1658 = vmatpush1.msra.mxu0 %v1498
        %1659 = vmatprep.subr.mxu0 %v1497
        %1660 = vmatpush1.msra.mxu0 %v1496
        %1661 = vmatprep.subr.mxu0 %v1495
        %1662 = vmatpush1.msra.mxu0 %v1494
        %1663 = vmatprep.subr.mxu0 0.0
        %1664 = vmatpush2.msra.mxu0 0.0
        %1665 = vmatprep.subr.mxu0 0.0
        %1666 = vmatpush2.msra.mxu0 0.0
        %1667 = vmatprep.subr.mxu0 0.0
        %1668 = vmatpush2.msra.mxu0 0.0
        %1669 = vmatprep.subr.mxu0 0.0
        %1670 = vmatpush2.msra.mxu0 0.0
        %1671 = vmatprep.subr.mxu0 0.0
        %1672 = vmatpush2.msra.mxu0 0.0
        %1673 = vmatprep.subr.mxu0 0.0
        %1674 = vmatpush2.msra.mxu0 0.0
        %1675 = vmatprep.subr.mxu0 0.0
        %1676 = vmatpush2.msra.mxu0 0.0
        %1677 = vmatprep.subr.mxu0 0.0
        %1678 = vmatpush2.msra.mxu0 0.0
        %1679 = vmatprep.subr.mxu0 0.0
        %1680 = vmatpush2.msra.mxu0 0.0
        %1681 = vmatprep.subr.mxu0 0.0
        %1682 = vmatpush2.msra.mxu0 0.0
        %1683 = vmatprep.subr.mxu0 0.0
        %1684 = vmatpush2.msra.mxu0 0.0
        %1685 = vmatprep.subr.mxu0 0.0
        %1686 = vmatpush2.msra.mxu0 0.0
        %1687 = vmatprep.subr.mxu0 0.0
        %1688 = vmatpush2.msra.mxu0 0.0
        %1689 = vmatprep.subr.mxu0 0.0
        %1690 = vmatpush2.msra.mxu0 0.0
        %1691 = vmatprep.subr.mxu0 0.0
        %1692 = vmatpush2.msra.mxu0 0.0
        %1693 = vmatprep.subr.mxu0 0.0
        %1694 = vmatpush2.msra.mxu0 0.0
        %1695 = vmatprep.mubr.f32.mxu0 0.0
        %1696 = vmatmul.mubr.f32.gmra.mxu0 %v1531
        %v1697 = vpop.f32.mrf.mxu0
        %v1698 = vadd.f32 %v1609, %v1697
        %v1699 = vpop.f32.mrf.mxu0
        %v1700 = vadd.f32 %v1611, %v1699
        %1701 = vmatprep.mubr.f32.mxu0 0.0
        %1702 = vmatmul.mubr.f32.gmra.mxu0 %v1534
        %v1703 = vpop.f32.mrf.mxu0
        %v1704 = vadd.f32 %v1615, %v1703
        %v1705 = vpop.f32.mrf.mxu0
        %v1706 = vadd.f32 %v1617, %v1705
        %1707 = vmatprep.mubr.f32.mxu0 0.0
        %1708 = vmatmul.mubr.f32.gmra.mxu0 %v1537
        %v1709 = vpop.f32.mrf.mxu0
        %v1710 = vadd.f32 %v1621, %v1709
        %v1711 = vpop.f32.mrf.mxu0
        %v1712 = vadd.f32 %v1623, %v1711
        %1713 = vmatprep.mubr.f32.mxu0 0.0
        %1714 = vmatmul.mubr.f32.gmra.mxu0 %v1540
        %v1715 = vpop.f32.mrf.mxu0
        %v1716 = vadd.f32 %v1627, %v1715
        %v1717 = vpop.f32.mrf.mxu0
        %v1718 = vadd.f32 %v1629, %v1717
        %1719 = vdwg.mxu0
        %1720 = vmatprep.subr.mxu0 0.0
        %1721 = vmatpush1.msra.mxu0 0.00390625
        %1722 = vmatprep.subr.mxu0 0.0
        %1723 = vmatpush1.msra.mxu0 0.00390625
        %1724 = vmatprep.subr.mxu0 0.0
        %1725 = vmatpush1.msra.mxu0 0.00390625
        %1726 = vmatprep.subr.mxu0 0.0
        %1727 = vmatpush1.msra.mxu0 0.00390625
        %1728 = vmatprep.subr.mxu0 0.0
        %1729 = vmatpush1.msra.mxu0 0.00390625
        %1730 = vmatprep.subr.mxu0 0.0
        %1731 = vmatpush1.msra.mxu0 0.00390625
        %1732 = vmatprep.subr.mxu0 0.0
        %1733 = vmatpush1.msra.mxu0 0.00390625
        %1734 = vmatprep.subr.mxu0 0.0
        %1735 = vmatpush1.msra.mxu0 0.00390625
        %1736 = vmatprep.subr.mxu0 0.0
        %1737 = vmatpush1.msra.mxu0 0.00390625
        %1738 = vmatprep.subr.mxu0 0.0
        %1739 = vmatpush1.msra.mxu0 0.00390625
        %1740 = vmatprep.subr.mxu0 0.0
        %1741 = vmatpush1.msra.mxu0 0.00390625
        %1742 = vmatprep.subr.mxu0 0.0
        %1743 = vmatpush1.msra.mxu0 0.00390625
        %1744 = vmatprep.subr.mxu0 0.0
        %1745 = vmatpush1.msra.mxu0 0.00390625
        %1746 = vmatprep.subr.mxu0 0.0
        %1747 = vmatpush1.msra.mxu0 0.00390625
        %1748 = vmatprep.subr.mxu0 0.0
        %1749 = vmatpush1.msra.mxu0 0.00390625
        %1750 = vmatprep.subr.mxu0 0.0
        %1751 = vmatpush1.msra.mxu0 0.00390625
        %1752 = vmatprep.subr.mxu0 0.0
        %1753 = vmatpush2.msra.mxu0 0.00390625
        %1754 = vmatprep.subr.mxu0 0.0
        %1755 = vmatpush2.msra.mxu0 0.00390625
        %1756 = vmatprep.subr.mxu0 0.0
        %1757 = vmatpush2.msra.mxu0 0.00390625
        %1758 = vmatprep.subr.mxu0 0.0
        %1759 = vmatpush2.msra.mxu0 0.00390625
        %1760 = vmatprep.subr.mxu0 0.0
        %1761 = vmatpush2.msra.mxu0 0.00390625
        %1762 = vmatprep.subr.mxu0 0.0
        %1763 = vmatpush2.msra.mxu0 0.00390625
        %1764 = vmatprep.subr.mxu0 0.0
        %1765 = vmatpush2.msra.mxu0 0.00390625
        %1766 = vmatprep.subr.mxu0 0.0
        %1767 = vmatpush2.msra.mxu0 0.00390625
        %1768 = vmatprep.subr.mxu0 0.0
        %1769 = vmatpush2.msra.mxu0 0.00390625
        %1770 = vmatprep.subr.mxu0 0.0
        %1771 = vmatpush2.msra.mxu0 0.00390625
        %1772 = vmatprep.subr.mxu0 0.0
        %1773 = vmatpush2.msra.mxu0 0.00390625
        %1774 = vmatprep.subr.mxu0 0.0
        %1775 = vmatpush2.msra.mxu0 0.00390625
        %1776 = vmatprep.subr.mxu0 0.0
        %1777 = vmatpush2.msra.mxu0 0.00390625
        %1778 = vmatprep.subr.mxu0 0.0
        %1779 = vmatpush2.msra.mxu0 0.00390625
        %1780 = vmatprep.subr.mxu0 0.0
        %1781 = vmatpush2.msra.mxu0 0.00390625
        %1782 = vmatprep.subr.mxu0 0.0
        %1783 = vmatpush2.msra.mxu0 0.00390625
        %1784 = vmatprep.mubr.f32.mxu0 %v1149
        %1785 = vmatmul.mubr.f32.gmra.mxu0 %v1148
        %v1786 = vpop.f32.mrf.mxu0
        %v1787 = vadd.f32 0.0, %v1786
        %v1788 = vpop.f32.mrf.mxu0
        %1789 = vmatprep.mubr.f32.mxu0 %v1151
        %1790 = vmatmul.mubr.f32.gmra.mxu0 %v1150
        %v1791 = vpop.f32.mrf.mxu0
        %v1792 = vadd.f32 0.0, %v1791
        %v1793 = vpop.f32.mrf.mxu0
        %1794 = vmatprep.mubr.f32.mxu0 %v1153
        %1795 = vmatmul.mubr.f32.gmra.mxu0 %v1152
        %v1796 = vpop.f32.mrf.mxu0
        %v1797 = vadd.f32 0.0, %v1796
        %v1798 = vpop.f32.mrf.mxu0
        %1799 = vmatprep.mubr.f32.mxu0 %v1155
        %1800 = vmatmul.mubr.f32.gmra.mxu0 %v1154
        %v1801 = vpop.f32.mrf.mxu0
        %v1802 = vadd.f32 0.0, %v1801
        %v1803 = vpop.f32.mrf.mxu0
        %1804 = vdwg.mxu0
        %1805 = vmatprep.subr.mxu0 0.0
        %1806 = vmatpush1.msra.mxu0 0.00390625
        %1807 = vmatprep.subr.mxu0 0.0
        %1808 = vmatpush1.msra.mxu0 0.00390625
        %1809 = vmatprep.subr.mxu0 0.0
        %1810 = vmatpush1.msra.mxu0 0.00390625
        %1811 = vmatprep.subr.mxu0 0.0
        %1812 = vmatpush1.msra.mxu0 0.00390625
        %1813 = vmatprep.subr.mxu0 0.0
        %1814 = vmatpush1.msra.mxu0 0.00390625
        %1815 = vmatprep.subr.mxu0 0.0
        %1816 = vmatpush1.msra.mxu0 0.00390625
        %1817 = vmatprep.subr.mxu0 0.0
        %1818 = vmatpush1.msra.mxu0 0.00390625
        %1819 = vmatprep.subr.mxu0 0.0
        %1820 = vmatpush1.msra.mxu0 0.00390625
        %1821 = vmatprep.subr.mxu0 0.0
        %1822 = vmatpush1.msra.mxu0 0.00390625
        %1823 = vmatprep.subr.mxu0 0.0
        %1824 = vmatpush1.msra.mxu0 0.00390625
        %1825 = vmatprep.subr.mxu0 0.0
        %1826 = vmatpush1.msra.mxu0 0.00390625
        %1827 = vmatprep.subr.mxu0 0.0
        %1828 = vmatpush1.msra.mxu0 0.00390625
        %1829 = vmatprep.subr.mxu0 0.0
        %1830 = vmatpush1.msra.mxu0 0.00390625
        %1831 = vmatprep.subr.mxu0 0.0
        %1832 = vmatpush1.msra.mxu0 0.00390625
        %1833 = vmatprep.subr.mxu0 0.0
        %1834 = vmatpush1.msra.mxu0 0.00390625
        %1835 = vmatprep.subr.mxu0 0.0
        %1836 = vmatpush1.msra.mxu0 0.00390625
        %1837 = vmatprep.subr.mxu0 0.0
        %1838 = vmatpush2.msra.mxu0 0.00390625
        %1839 = vmatprep.subr.mxu0 0.0
        %1840 = vmatpush2.msra.mxu0 0.00390625
        %1841 = vmatprep.subr.mxu0 0.0
        %1842 = vmatpush2.msra.mxu0 0.00390625
        %1843 = vmatprep.subr.mxu0 0.0
        %1844 = vmatpush2.msra.mxu0 0.00390625
        %1845 = vmatprep.subr.mxu0 0.0
        %1846 = vmatpush2.msra.mxu0 0.00390625
        %1847 = vmatprep.subr.mxu0 0.0
        %1848 = vmatpush2.msra.mxu0 0.00390625
        %1849 = vmatprep.subr.mxu0 0.0
        %1850 = vmatpush2.msra.mxu0 0.00390625
        %1851 = vmatprep.subr.mxu0 0.0
        %1852 = vmatpush2.msra.mxu0 0.00390625
        %1853 = vmatprep.subr.mxu0 0.0
        %1854 = vmatpush2.msra.mxu0 0.00390625
        %1855 = vmatprep.subr.mxu0 0.0
        %1856 = vmatpush2.msra.mxu0 0.00390625
        %1857 = vmatprep.subr.mxu0 0.0
        %1858 = vmatpush2.msra.mxu0 0.00390625
        %1859 = vmatprep.subr.mxu0 0.0
        %1860 = vmatpush2.msra.mxu0 0.00390625
        %1861 = vmatprep.subr.mxu0 0.0
        %1862 = vmatpush2.msra.mxu0 0.00390625
        %1863 = vmatprep.subr.mxu0 0.0
        %1864 = vmatpush2.msra.mxu0 0.00390625
        %1865 = vmatprep.subr.mxu0 0.0
        %1866 = vmatpush2.msra.mxu0 0.00390625
        %1867 = vmatprep.subr.mxu0 0.0
        %1868 = vmatpush2.msra.mxu0 0.00390625
        %1869 = vmatprep.mubr.f32.mxu0 %v1700
        %1870 = vmatmul.mubr.f32.gmra.mxu0 %v1698
        %v1871 = vpop.f32.mrf.mxu0
        %v1872 = vadd.f32 0.0, %v1871
        %v1873 = vpop.f32.mrf.mxu0
        %1874 = vmatprep.mubr.f32.mxu0 %v1706
        %1875 = vmatmul.mubr.f32.gmra.mxu0 %v1704
        %v1876 = vpop.f32.mrf.mxu0
        %v1877 = vadd.f32 0.0, %v1876
        %v1878 = vpop.f32.mrf.mxu0
        %1879 = vmatprep.mubr.f32.mxu0 %v1712
        %1880 = vmatmul.mubr.f32.gmra.mxu0 %v1710
        %v1881 = vpop.f32.mrf.mxu0
        %v1882 = vadd.f32 0.0, %v1881
        %v1883 = vpop.f32.mrf.mxu0
        %1884 = vmatprep.mubr.f32.mxu0 %v1718
        %1885 = vmatmul.mubr.f32.gmra.mxu0 %v1716
        %v1886 = vpop.f32.mrf.mxu0
        %v1887 = vadd.f32 0.0, %v1886
        %v1888 = vpop.f32.mrf.mxu0
        %1889 = vdwg.mxu0
        %1894 = vrot.lane.b32.xlu0 %v1872, 1
        %v1895 = vpop.permute.xlu0 %1894
        %1896 = vrot.lane.b32.xlu0 %v1877, 1
        %v1897 = vpop.permute.xlu0 %1896
        %1898 = vrot.lane.b32.xlu0 %v1882, 1
        %v1899 = vpop.permute.xlu0 %1898
        %1900 = vrot.lane.b32.xlu0 %v1887, 1
        %v1901 = vpop.permute.xlu0 %1900
        %vm1906 = vcmask 7168
        %v1907 = vsel %vm1906, %v1787, %v1895
        %v1908 = vsel %vm1906, %v1792, %v1897
        %v1909 = vsel %vm1906, %v1797, %v1899
        %v1910 = vsel %vm1906, %v1802, %v1901
        %v1912 = vsel %vm514, %v372, 0
        %1914 = vmatprep.subr.mxu0 0.0
        %1915 = vmatpush1.msra.mxu0 0.0
        %1916 = vmatprep.subr.mxu0 0.0
        %1917 = vmatpush1.msra.mxu0 0.0
        %1918 = vmatprep.subr.mxu0 0.0
        %1919 = vmatpush1.msra.mxu0 0.0
        %1920 = vmatprep.subr.mxu0 0.0
        %1921 = vmatpush1.msra.mxu0 0.0
        %1922 = vmatprep.subr.mxu0 0.0
        %1923 = vmatpush1.msra.mxu0 0.0
        %1924 = vmatprep.subr.mxu0 0.0
        %1925 = vmatpush1.msra.mxu0 0.0
        %1926 = vmatprep.subr.mxu0 0.0
        %1927 = vmatpush1.msra.mxu0 0.0
        %1928 = vmatprep.subr.mxu0 0.0
        %1929 = vmatpush1.msra.mxu0 0.0
        %1930 = vmatprep.subr.mxu0 0.0
        %1931 = vmatpush1.msra.mxu0 0.0
        %1932 = vmatprep.subr.mxu0 0.0
        %1933 = vmatpush1.msra.mxu0 0.0
        %1934 = vmatprep.subr.mxu0 0.0
        %1935 = vmatpush1.msra.mxu0 0.0
        %1936 = vmatprep.subr.mxu0 0.0
        %1937 = vmatpush1.msra.mxu0 0.0
        %1938 = vmatprep.subr.mxu0 0.0
        %1939 = vmatpush1.msra.mxu0 %v1910
        %1940 = vmatprep.subr.mxu0 0.0
        %1941 = vmatpush1.msra.mxu0 %v1909
        %1942 = vmatprep.subr.mxu0 0.0
        %1943 = vmatpush1.msra.mxu0 %v1908
        %1944 = vmatprep.subr.mxu0 0.0
        %1945 = vmatpush1.msra.mxu0 %v1907
        %1946 = vmatprep.subr.mxu0 0.0
        %1947 = vmatpush2.msra.mxu0 0.0
        %1948 = vmatprep.subr.mxu0 0.0
        %1949 = vmatpush2.msra.mxu0 0.0
        %1950 = vmatprep.subr.mxu0 0.0
        %1951 = vmatpush2.msra.mxu0 0.0
        %1952 = vmatprep.subr.mxu0 0.0
        %1953 = vmatpush2.msra.mxu0 0.0
        %1954 = vmatprep.subr.mxu0 0.0
        %1955 = vmatpush2.msra.mxu0 0.0
        %1956 = vmatprep.subr.mxu0 0.0
        %1957 = vmatpush2.msra.mxu0 0.0
        %1958 = vmatprep.subr.mxu0 0.0
        %1959 = vmatpush2.msra.mxu0 0.0
        %1960 = vmatprep.subr.mxu0 0.0
        %1961 = vmatpush2.msra.mxu0 0.0
        %1962 = vmatprep.subr.mxu0 0.0
        %1963 = vmatpush2.msra.mxu0 0.0
        %1964 = vmatprep.subr.mxu0 0.0
        %1965 = vmatpush2.msra.mxu0 0.0
        %1966 = vmatprep.subr.mxu0 0.0
        %1967 = vmatpush2.msra.mxu0 0.0
        %1968 = vmatprep.subr.mxu0 0.0
        %1969 = vmatpush2.msra.mxu0 0.0
        %1970 = vmatprep.subr.mxu0 0.0
        %1971 = vmatpush2.msra.mxu0 0.0
        %1972 = vmatprep.subr.mxu0 0.0
        %1973 = vmatpush2.msra.mxu0 0.0
        %1974 = vmatprep.subr.mxu0 0.0
        %1975 = vmatpush2.msra.mxu0 0.0
        %1976 = vmatprep.subr.mxu0 0.0
        %1977 = vmatpush2.msra.mxu0 0.0
        %1978 = vmatprep.mubr.f32.mxu0 0.0
        %1979 = vmatmul.mubr.f32.gmra.mxu0 %v1912
        %v1980 = vpop.f32.mrf.mxu0
        %v1981 = vadd.f32 0.0, %v1980
        %v1982 = vpop.f32.mrf.mxu0
        %1983 = vdwg.mxu0
        %vm1984 = vcmask 64512
        %v1986 = vsel %vm1984, %v368, 0
        %v1989 = vsel %vm1984, %v369, 0
        %v1992 = vsel %vm1984, %v370, 0
        %v1995 = vsel %vm1984, %v371, 0
        %1997 = vmatprep.subr.mxu0 0.0
        %1998 = vmatpush1.msra.mxu0 0.0
        %1999 = vmatprep.subr.mxu0 0.0
        %2000 = vmatpush1.msra.mxu0 0.0
        %2001 = vmatprep.subr.mxu0 0.0
        %2002 = vmatpush1.msra.mxu0 0.0
        %2003 = vmatprep.subr.mxu0 0.0
        %2004 = vmatpush1.msra.mxu0 0.0
        %2005 = vmatprep.subr.mxu0 0.0
        %2006 = vmatpush1.msra.mxu0 0.0
        %2007 = vmatprep.subr.mxu0 0.0
        %2008 = vmatpush1.msra.mxu0 0.0
        %2009 = vmatprep.subr.mxu0 0.0
        %2010 = vmatpush1.msra.mxu0 0.0
        %2011 = vmatprep.subr.mxu0 0.0
        %2012 = vmatpush1.msra.mxu0 0.0
        %2013 = vmatprep.subr.mxu0 0.0
        %2014 = vmatpush1.msra.mxu0 0.0
        %2015 = vmatprep.subr.mxu0 0.0
        %2016 = vmatpush1.msra.mxu0 0.0
        %2017 = vmatprep.subr.mxu0 0.0
        %2018 = vmatpush1.msra.mxu0 0.0
        %2019 = vmatprep.subr.mxu0 0.0
        %2020 = vmatpush1.msra.mxu0 0.0
        %2021 = vmatprep.subr.mxu0 0.0
        %2022 = vmatpush1.msra.mxu0 0.0
        %2023 = vmatprep.subr.mxu0 0.0
        %2024 = vmatpush1.msra.mxu0 0.0
        %2025 = vmatprep.subr.mxu0 0.0
        %2026 = vmatpush1.msra.mxu0 0.0
        %2027 = vmatprep.subr.mxu0 0.0
        %2028 = vmatpush1.msra.mxu0 %v1981
        %2029 = vmatprep.subr.mxu0 0.0
        %2030 = vmatpush2.msra.mxu0 0.0
        %2031 = vmatprep.subr.mxu0 0.0
        %2032 = vmatpush2.msra.mxu0 0.0
        %2033 = vmatprep.subr.mxu0 0.0
        %2034 = vmatpush2.msra.mxu0 0.0
        %2035 = vmatprep.subr.mxu0 0.0
        %2036 = vmatpush2.msra.mxu0 0.0
        %2037 = vmatprep.subr.mxu0 0.0
        %2038 = vmatpush2.msra.mxu0 0.0
        %2039 = vmatprep.subr.mxu0 0.0
        %2040 = vmatpush2.msra.mxu0 0.0
        %2041 = vmatprep.subr.mxu0 0.0
        %2042 = vmatpush2.msra.mxu0 0.0
        %2043 = vmatprep.subr.mxu0 0.0
        %2044 = vmatpush2.msra.mxu0 0.0
        %2045 = vmatprep.subr.mxu0 0.0
        %2046 = vmatpush2.msra.mxu0 0.0
        %2047 = vmatprep.subr.mxu0 0.0
        %2048 = vmatpush2.msra.mxu0 0.0
        %2049 = vmatprep.subr.mxu0 0.0
        %2050 = vmatpush2.msra.mxu0 0.0
        %2051 = vmatprep.subr.mxu0 0.0
        %2052 = vmatpush2.msra.mxu0 0.0
        %2053 = vmatprep.subr.mxu0 0.0
        %2054 = vmatpush2.msra.mxu0 0.0
        %2055 = vmatprep.subr.mxu0 0.0
        %2056 = vmatpush2.msra.mxu0 0.0
        %2057 = vmatprep.subr.mxu0 0.0
        %2058 = vmatpush2.msra.mxu0 0.0
        %2059 = vmatprep.subr.mxu0 0.0
        %2060 = vmatpush2.msra.mxu0 0.0
        %2061 = vmatprep.mubr.f32.mxu0 0.0
        %2062 = vmatmul.mubr.f32.gmra.mxu0 %v1986
        %v2063 = vpop.f32.mrf.mxu0
        %v2064 = vadd.f32 0.0, %v2063
        %v2065 = vpop.f32.mrf.mxu0
        %2066 = vmatprep.mubr.f32.mxu0 0.0
        %2067 = vmatmul.mubr.f32.gmra.mxu0 %v1989
        %v2068 = vpop.f32.mrf.mxu0
        %v2069 = vadd.f32 0.0, %v2068
        %v2070 = vpop.f32.mrf.mxu0
        %2071 = vmatprep.mubr.f32.mxu0 0.0
        %2072 = vmatmul.mubr.f32.gmra.mxu0 %v1992
        %v2073 = vpop.f32.mrf.mxu0
        %v2074 = vadd.f32 0.0, %v2073
        %v2075 = vpop.f32.mrf.mxu0
        %2076 = vmatprep.mubr.f32.mxu0 0.0
        %2077 = vmatmul.mubr.f32.gmra.mxu0 %v1995
        %v2078 = vpop.f32.mrf.mxu0
        %v2079 = vadd.f32 0.0, %v2078
        %v2080 = vpop.f32.mrf.mxu0
        %2081 = vdwg.mxu0
        %v2082 = vmul.f32 %v2064, 0.25
        %v2083 = vmul.f32 %v2069, 0.25
        %v2084 = vmul.f32 %v2074, 0.25
        %v2085 = vmul.f32 %v2079, 0.25
        %v2086 = vsub.f32 %v1907, %v2082
        %v2087 = vsub.f32 %v1908, %v2083
        %v2088 = vsub.f32 %v1909, %v2084
        %v2089 = vsub.f32 %v1910, %v2085
        %v2090 = vmul.f32 %v2086, 1.442695
        %v2091 = vpow.pop %v2090
        %v2092 = vmul.f32 %v2087, 1.442695
        %v2093 = vpow.pop %v2092
        %v2094 = vmul.f32 %v2088, 1.442695
        %v2095 = vpow.pop %v2094
        %v2096 = vmul.f32 %v2089, 1.442695
        %v2097 = vpow.pop %v2096
        %2098 = vmatprep.subr.mxu0 0.0
        %2099 = vmatpush1.msra.mxu0 0.0
        %2100 = vmatprep.subr.mxu0 0.0
        %2101 = vmatpush1.msra.mxu0 0.0
        %2102 = vmatprep.subr.mxu0 0.0
        %2103 = vmatpush1.msra.mxu0 0.0
        %2104 = vmatprep.subr.mxu0 0.0
        %2105 = vmatpush1.msra.mxu0 0.0
        %2106 = vmatprep.subr.mxu0 0.0
        %2107 = vmatpush1.msra.mxu0 0.0
        %2108 = vmatprep.subr.mxu0 0.0
        %2109 = vmatpush1.msra.mxu0 0.0
        %2110 = vmatprep.subr.mxu0 0.0
        %2111 = vmatpush1.msra.mxu0 0.0
        %2112 = vmatprep.subr.mxu0 0.0
        %2113 = vmatpush1.msra.mxu0 0.0
        %2114 = vmatprep.subr.mxu0 0.0
        %2115 = vmatpush1.msra.mxu0 0.0
        %2116 = vmatprep.subr.mxu0 0.0
        %2117 = vmatpush1.msra.mxu0 0.0
        %2118 = vmatprep.subr.mxu0 0.0
        %2119 = vmatpush1.msra.mxu0 0.0
        %2120 = vmatprep.subr.mxu0 0.0
        %2121 = vmatpush1.msra.mxu0 0.0
        %2122 = vmatprep.subr.mxu0 0.0
        %2123 = vmatpush1.msra.mxu0 %v2097
        %2124 = vmatprep.subr.mxu0 0.0
        %2125 = vmatpush1.msra.mxu0 %v2095
        %2126 = vmatprep.subr.mxu0 0.0
        %2127 = vmatpush1.msra.mxu0 %v2093
        %2128 = vmatprep.subr.mxu0 0.0
        %2129 = vmatpush1.msra.mxu0 %v2091
        %2130 = vmatprep.subr.mxu0 0.0
        %2131 = vmatpush2.msra.mxu0 0.0
        %2132 = vmatprep.subr.mxu0 0.0
        %2133 = vmatpush2.msra.mxu0 0.0
        %2134 = vmatprep.subr.mxu0 0.0
        %2135 = vmatpush2.msra.mxu0 0.0
        %2136 = vmatprep.subr.mxu0 0.0
        %2137 = vmatpush2.msra.mxu0 0.0
        %2138 = vmatprep.subr.mxu0 0.0
        %2139 = vmatpush2.msra.mxu0 0.0
        %2140 = vmatprep.subr.mxu0 0.0
        %2141 = vmatpush2.msra.mxu0 0.0
        %2142 = vmatprep.subr.mxu0 0.0
        %2143 = vmatpush2.msra.mxu0 0.0
        %2144 = vmatprep.subr.mxu0 0.0
        %2145 = vmatpush2.msra.mxu0 0.0
        %2146 = vmatprep.subr.mxu0 0.0
        %2147 = vmatpush2.msra.mxu0 0.0
        %2148 = vmatprep.subr.mxu0 0.0
        %2149 = vmatpush2.msra.mxu0 0.0
        %2150 = vmatprep.subr.mxu0 0.0
        %2151 = vmatpush2.msra.mxu0 0.0
        %2152 = vmatprep.subr.mxu0 0.0
        %2153 = vmatpush2.msra.mxu0 0.0
        %2154 = vmatprep.subr.mxu0 0.0
        %2155 = vmatpush2.msra.mxu0 0.0
        %2156 = vmatprep.subr.mxu0 0.0
        %2157 = vmatpush2.msra.mxu0 0.0
        %2158 = vmatprep.subr.mxu0 0.0
        %2159 = vmatpush2.msra.mxu0 0.0
        %2160 = vmatprep.subr.mxu0 0.0
        %2161 = vmatpush2.msra.mxu0 0.0
        %2162 = vmatprep.mubr.f32.mxu0 0.0
        %2163 = vmatmul.mubr.f32.gmra.mxu0 %v1912
        %v2164 = vpop.f32.mrf.mxu0
        %v2165 = vadd.f32 0.0, %v2164
        %v2166 = vpop.f32.mrf.mxu0
        %2167 = vdwg.mxu0
        %2168 = vmatprep.subr.mxu0 0.0
        %2169 = vmatpush1.msra.mxu0 0.0
        %2170 = vmatprep.subr.mxu0 0.0
        %2171 = vmatpush1.msra.mxu0 0.0
        %2172 = vmatprep.subr.mxu0 0.0
        %2173 = vmatpush1.msra.mxu0 0.0
        %2174 = vmatprep.subr.mxu0 0.0
        %2175 = vmatpush1.msra.mxu0 0.0
        %2176 = vmatprep.subr.mxu0 0.0
        %2177 = vmatpush1.msra.mxu0 0.0
        %2178 = vmatprep.subr.mxu0 0.0
        %2179 = vmatpush1.msra.mxu0 0.0
        %2180 = vmatprep.subr.mxu0 0.0
        %2181 = vmatpush1.msra.mxu0 0.0
        %2182 = vmatprep.subr.mxu0 0.0
        %2183 = vmatpush1.msra.mxu0 0.0
        %2184 = vmatprep.subr.mxu0 0.0
        %2185 = vmatpush1.msra.mxu0 0.0
        %2186 = vmatprep.subr.mxu0 0.0
        %2187 = vmatpush1.msra.mxu0 0.0
        %2188 = vmatprep.subr.mxu0 0.0
        %2189 = vmatpush1.msra.mxu0 0.0
        %2190 = vmatprep.subr.mxu0 0.0
        %2191 = vmatpush1.msra.mxu0 0.0
        %2192 = vmatprep.subr.mxu0 0.0
        %2193 = vmatpush1.msra.mxu0 0.0
        %2194 = vmatprep.subr.mxu0 0.0
        %2195 = vmatpush1.msra.mxu0 0.0
        %2196 = vmatprep.subr.mxu0 0.0
        %2197 = vmatpush1.msra.mxu0 0.0
        %2198 = vmatprep.subr.mxu0 0.0
        %2199 = vmatpush1.msra.mxu0 %v2165
        %2200 = vmatprep.subr.mxu0 0.0
        %2201 = vmatpush2.msra.mxu0 0.0
        %2202 = vmatprep.subr.mxu0 0.0
        %2203 = vmatpush2.msra.mxu0 0.0
        %2204 = vmatprep.subr.mxu0 0.0
        %2205 = vmatpush2.msra.mxu0 0.0
        %2206 = vmatprep.subr.mxu0 0.0
        %2207 = vmatpush2.msra.mxu0 0.0
        %2208 = vmatprep.subr.mxu0 0.0
        %2209 = vmatpush2.msra.mxu0 0.0
        %2210 = vmatprep.subr.mxu0 0.0
        %2211 = vmatpush2.msra.mxu0 0.0
        %2212 = vmatprep.subr.mxu0 0.0
        %2213 = vmatpush2.msra.mxu0 0.0
        %2214 = vmatprep.subr.mxu0 0.0
        %2215 = vmatpush2.msra.mxu0 0.0
        %2216 = vmatprep.subr.mxu0 0.0
        %2217 = vmatpush2.msra.mxu0 0.0
        %2218 = vmatprep.subr.mxu0 0.0
        %2219 = vmatpush2.msra.mxu0 0.0
        %2220 = vmatprep.subr.mxu0 0.0
        %2221 = vmatpush2.msra.mxu0 0.0
        %2222 = vmatprep.subr.mxu0 0.0
        %2223 = vmatpush2.msra.mxu0 0.0
        %2224 = vmatprep.subr.mxu0 0.0
        %2225 = vmatpush2.msra.mxu0 0.0
        %2226 = vmatprep.subr.mxu0 0.0
        %2227 = vmatpush2.msra.mxu0 0.0
        %2228 = vmatprep.subr.mxu0 0.0
        %2229 = vmatpush2.msra.mxu0 0.0
        %2230 = vmatprep.subr.mxu0 0.0
        %2231 = vmatpush2.msra.mxu0 0.0
        %2232 = vmatprep.mubr.f32.mxu0 0.0
        %2233 = vmatmul.mubr.f32.gmra.mxu0 %v1986
        %v2234 = vpop.f32.mrf.mxu0
        %v2235 = vadd.f32 0.0, %v2234
        %v2236 = vpop.f32.mrf.mxu0
        %2237 = vmatprep.mubr.f32.mxu0 0.0
        %2238 = vmatmul.mubr.f32.gmra.mxu0 %v1989
        %v2239 = vpop.f32.mrf.mxu0
        %v2240 = vadd.f32 0.0, %v2239
        %v2241 = vpop.f32.mrf.mxu0
        %2242 = vmatprep.mubr.f32.mxu0 0.0
        %2243 = vmatmul.mubr.f32.gmra.mxu0 %v1992
        %v2244 = vpop.f32.mrf.mxu0
        %v2245 = vadd.f32 0.0, %v2244
        %v2246 = vpop.f32.mrf.mxu0
        %2247 = vmatprep.mubr.f32.mxu0 0.0
        %2248 = vmatmul.mubr.f32.gmra.mxu0 %v1995
        %v2249 = vpop.f32.mrf.mxu0
        %v2250 = vadd.f32 0.0, %v2249
        %v2251 = vpop.f32.mrf.mxu0
        %2252 = vdwg.mxu0
        %v2253 = vrcp.pop %v2235
        %v2254 = vmul.f32 %v2091, %v2253
        %v2255 = vrcp.pop %v2240
        %v2256 = vmul.f32 %v2093, %v2255
        %v2257 = vrcp.pop %v2245
        %v2258 = vmul.f32 %v2095, %v2257
        %v2259 = vrcp.pop %v2250
        %v2260 = vmul.f32 %v2097, %v2259
        %2262 = vset.pattern.permute.xlu0 0
        %2263 = vperm.xlu0 %2262, %v2254
        %v2264 = vpop.permute.xlu0 %2263
        %2267 = vset.pattern.permute.xlu0 0
        %2268 = vperm.xlu0 %2267, %v2256
        %v2269 = vpop.permute.xlu0 %2268
        %2272 = vset.pattern.permute.xlu0 0
        %2273 = vperm.xlu0 %2272, %v2258
        %v2274 = vpop.permute.xlu0 %2273
        %2277 = vset.pattern.permute.xlu0 0
        %2278 = vperm.xlu0 %2277, %v2260
        %v2279 = vpop.permute.xlu0 %2278
        %v2281 = vmul.f32 %v2264, %v1698
        %v2282 = vmul.f32 %v2264, %v1700
        %v2283 = vmul.f32 %v2269, %v1704
        %v2284 = vmul.f32 %v2269, %v1706
        %v2285 = vmul.f32 %v2274, %v1710
        %v2286 = vmul.f32 %v2274, %v1712
        %v2287 = vmul.f32 %v2279, %v1716
        %v2288 = vmul.f32 %v2279, %v1718
        %2289 = vset.pattern.permute.xlu0 1
        %2290 = vperm.xlu0 %2289, %v2254
        %v2291 = vpop.permute.xlu0 %2290
        %2293 = vset.pattern.permute.xlu0 1
        %2294 = vperm.xlu0 %2293, %v2256
        %v2295 = vpop.permute.xlu0 %2294
        %2297 = vset.pattern.permute.xlu0 1
        %2298 = vperm.xlu0 %2297, %v2258
        %v2299 = vpop.permute.xlu0 %2298
        %2301 = vset.pattern.permute.xlu0 1
        %2302 = vperm.xlu0 %2301, %v2260
        %v2303 = vpop.permute.xlu0 %2302
        %v2305 = vmul.f32 %v2291, %v1148
        %v2306 = vmul.f32 %v2291, %v1149
        %v2307 = vmul.f32 %v2295, %v1150
        %v2308 = vmul.f32 %v2295, %v1151
        %v2309 = vmul.f32 %v2299, %v1152
        %v2310 = vmul.f32 %v2299, %v1153
        %v2311 = vmul.f32 %v2303, %v1154
        %v2312 = vmul.f32 %v2303, %v1155
        %v2313 = vadd.f32 %v2281, %v2305
        %v2314 = vadd.f32 %v2282, %v2306
        %v2315 = vadd.f32 %v2283, %v2307
        %v2316 = vadd.f32 %v2284, %v2308
        %v2317 = vadd.f32 %v2285, %v2309
        %v2318 = vadd.f32 %v2286, %v2310
        %v2319 = vadd.f32 %v2287, %v2311
        %v2320 = vadd.f32 %v2288, %v2312
        %2321 = vmatprep.subr.mxu0 0.0
        %2322 = vmatpush1.msra.mxu0 0.0
        %2323 = vmatprep.subr.mxu0 0.0
        %2324 = vmatpush1.msra.mxu0 0.0
        %2325 = vmatprep.subr.mxu0 0.0
        %2326 = vmatpush1.msra.mxu0 0.0
        %2327 = vmatprep.subr.mxu0 0.0
        %2328 = vmatpush1.msra.mxu0 0.0
        %2329 = vmatprep.subr.mxu0 0.0
        %2330 = vmatpush1.msra.mxu0 0.0
        %2331 = vmatprep.subr.mxu0 0.0
        %2332 = vmatpush1.msra.mxu0 0.0
        %2333 = vmatprep.subr.mxu0 0.0
        %2334 = vmatpush1.msra.mxu0 0.0
        %2335 = vmatprep.subr.mxu0 0.0
        %2336 = vmatpush1.msra.mxu0 0.0
        %2337 = vmatprep.subr.mxu0 0.0
        %2338 = vmatpush1.msra.mxu0 0.0
        %2339 = vmatprep.subr.mxu0 0.0
        %2340 = vmatpush1.msra.mxu0 0.0
        %2341 = vmatprep.subr.mxu0 0.0
        %2342 = vmatpush1.msra.mxu0 0.0
        %2343 = vmatprep.subr.mxu0 0.0
        %2344 = vmatpush1.msra.mxu0 0.0
        %2345 = vmatprep.subr.mxu0 %v2320
        %2346 = vmatpush1.msra.mxu0 %v2319
        %2347 = vmatprep.subr.mxu0 %v2318
        %2348 = vmatpush1.msra.mxu0 %v2317
        %2349 = vmatprep.subr.mxu0 %v2316
        %2350 = vmatpush1.msra.mxu0 %v2315
        %2351 = vmatprep.subr.mxu0 %v2314
        %2352 = vmatpush1.msra.mxu0 %v2313
        %2353 = vmatprep.subr.mxu0 0.0
        %2354 = vmatpush2.msra.mxu0 0.0
        %2355 = vmatprep.subr.mxu0 0.0
        %2356 = vmatpush2.msra.mxu0 0.0
        %2357 = vmatprep.subr.mxu0 0.0
        %2358 = vmatpush2.msra.mxu0 0.0
        %2359 = vmatprep.subr.mxu0 0.0
        %2360 = vmatpush2.msra.mxu0 0.0
        %2361 = vmatprep.subr.mxu0 0.0
        %2362 = vmatpush2.msra.mxu0 0.0
        %2363 = vmatprep.subr.mxu0 0.0
        %2364 = vmatpush2.msra.mxu0 0.0
        %2365 = vmatprep.subr.mxu0 0.0
        %2366 = vmatpush2.msra.mxu0 0.0
        %2367 = vmatprep.subr.mxu0 0.0
        %2368 = vmatpush2.msra.mxu0 0.0
        %2369 = vmatprep.subr.mxu0 0.0
        %2370 = vmatpush2.msra.mxu0 0.0
        %2371 = vmatprep.subr.mxu0 0.0
        %2372 = vmatpush2.msra.mxu0 0.0
        %2373 = vmatprep.subr.mxu0 0.0
        %2374 = vmatpush2.msra.mxu0 0.0
        %2375 = vmatprep.subr.mxu0 0.0
        %2376 = vmatpush2.msra.mxu0 0.0
        %2377 = vmatprep.subr.mxu0 0.0
        %2378 = vmatpush2.msra.mxu0 0.0
        %2379 = vmatprep.subr.mxu0 0.0
        %2380 = vmatpush2.msra.mxu0 0.0
        %2381 = vmatprep.subr.mxu0 0.0
        %2382 = vmatpush2.msra.mxu0 0.0
        %2383 = vmatprep.subr.mxu0 0.0
        %2384 = vmatpush2.msra.mxu0 0.0
        %2385 = vmatprep.mubr.f32.mxu0 0.0
        %2386 = vmatmul.mubr.f32.gmra.mxu0 %v1912
        %v2387 = vpop.f32.mrf.mxu0
        %v2388 = vadd.f32 0.0, %v2387
        %v2389 = vpop.f32.mrf.mxu0
        %v2390 = vadd.f32 0.0, %v2389
        %2391 = vdwg.mxu0
        %v2392 = vxor.u32 %v2388, 2147483648
        %v2393 = vxor.u32 %v2390, 2147483648
        %v2394 = vmul.f32 %v2392, 1.442695
        %v2395 = vpow.pop %v2394
        %v2396 = vmul.f32 %v2393, 1.442695
        %v2397 = vpow.pop %v2396
        %v2398 = vadd.f32 %v2395, 1.0
        %v2399 = vadd.f32 %v2397, 1.0
        %v2400 = vrcp.pop %v2398
        %v2401 = vmul.f32 1.0, %v2400
        %v2402 = vrcp.pop %v2399
        %v2403 = vmul.f32 1.0, %v2402
        %2404 = vmatprep.subr.mxu0 0.0
        %2405 = vmatpush1.msra.mxu0 0.0
        %2406 = vmatprep.subr.mxu0 0.0
        %2407 = vmatpush1.msra.mxu0 0.0
        %2408 = vmatprep.subr.mxu0 0.0
        %2409 = vmatpush1.msra.mxu0 0.0
        %2410 = vmatprep.subr.mxu0 0.0
        %2411 = vmatpush1.msra.mxu0 0.0
        %2412 = vmatprep.subr.mxu0 0.0
        %2413 = vmatpush1.msra.mxu0 0.0
        %2414 = vmatprep.subr.mxu0 0.0
        %2415 = vmatpush1.msra.mxu0 0.0
        %2416 = vmatprep.subr.mxu0 0.0
        %2417 = vmatpush1.msra.mxu0 0.0
        %2418 = vmatprep.subr.mxu0 0.0
        %2419 = vmatpush1.msra.mxu0 0.0
        %2420 = vmatprep.subr.mxu0 0.0
        %2421 = vmatpush1.msra.mxu0 0.0
        %2422 = vmatprep.subr.mxu0 0.0
        %2423 = vmatpush1.msra.mxu0 0.0
        %2424 = vmatprep.subr.mxu0 0.0
        %2425 = vmatpush1.msra.mxu0 0.0
        %2426 = vmatprep.subr.mxu0 0.0
        %2427 = vmatpush1.msra.mxu0 0.0
        %2428 = vmatprep.subr.mxu0 0.0
        %2429 = vmatpush1.msra.mxu0 0.0
        %2430 = vmatprep.subr.mxu0 0.0
        %2431 = vmatpush1.msra.mxu0 0.0
        %2432 = vmatprep.subr.mxu0 0.0
        %2433 = vmatpush1.msra.mxu0 0.0
        %2434 = vmatprep.subr.mxu0 %v2403
        %2435 = vmatpush1.msra.mxu0 %v2401
        %2436 = vmatprep.subr.mxu0 0.0
        %2437 = vmatpush2.msra.mxu0 0.0
        %2438 = vmatprep.subr.mxu0 0.0
        %2439 = vmatpush2.msra.mxu0 0.0
        %2440 = vmatprep.subr.mxu0 0.0
        %2441 = vmatpush2.msra.mxu0 0.0
        %2442 = vmatprep.subr.mxu0 0.0
        %2443 = vmatpush2.msra.mxu0 0.0
        %2444 = vmatprep.subr.mxu0 0.0
        %2445 = vmatpush2.msra.mxu0 0.0
        %2446 = vmatprep.subr.mxu0 0.0
        %2447 = vmatpush2.msra.mxu0 0.0
        %2448 = vmatprep.subr.mxu0 0.0
        %2449 = vmatpush2.msra.mxu0 0.0
        %2450 = vmatprep.subr.mxu0 0.0
        %2451 = vmatpush2.msra.mxu0 0.0
        %2452 = vmatprep.subr.mxu0 0.0
        %2453 = vmatpush2.msra.mxu0 0.0
        %2454 = vmatprep.subr.mxu0 0.0
        %2455 = vmatpush2.msra.mxu0 0.0
        %2456 = vmatprep.subr.mxu0 0.0
        %2457 = vmatpush2.msra.mxu0 0.0
        %2458 = vmatprep.subr.mxu0 0.0
        %2459 = vmatpush2.msra.mxu0 0.0
        %2460 = vmatprep.subr.mxu0 0.0
        %2461 = vmatpush2.msra.mxu0 0.0
        %2462 = vmatprep.subr.mxu0 0.0
        %2463 = vmatpush2.msra.mxu0 0.0
        %2464 = vmatprep.subr.mxu0 0.0
        %2465 = vmatpush2.msra.mxu0 0.0
        %2466 = vmatprep.subr.mxu0 0.0
        %2467 = vmatpush2.msra.mxu0 0.0
        %2468 = vmatprep.mubr.f32.mxu0 0.0
        %2469 = vmatmul.mubr.f32.gmra.mxu0 %v1986
        %v2470 = vpop.f32.mrf.mxu0
        %v2471 = vadd.f32 0.0, %v2470
        %v2472 = vpop.f32.mrf.mxu0
        %v2473 = vadd.f32 0.0, %v2472
        %2474 = vmatprep.mubr.f32.mxu0 0.0
        %2475 = vmatmul.mubr.f32.gmra.mxu0 %v1989
        %v2476 = vpop.f32.mrf.mxu0
        %v2477 = vadd.f32 0.0, %v2476
        %v2478 = vpop.f32.mrf.mxu0
        %v2479 = vadd.f32 0.0, %v2478
        %2480 = vmatprep.mubr.f32.mxu0 0.0
        %2481 = vmatmul.mubr.f32.gmra.mxu0 %v1992
        %v2482 = vpop.f32.mrf.mxu0
        %v2483 = vadd.f32 0.0, %v2482
        %v2484 = vpop.f32.mrf.mxu0
        %v2485 = vadd.f32 0.0, %v2484
        %2486 = vmatprep.mubr.f32.mxu0 0.0
        %2487 = vmatmul.mubr.f32.gmra.mxu0 %v1995
        %v2488 = vpop.f32.mrf.mxu0
        %v2489 = vadd.f32 0.0, %v2488
        %v2490 = vpop.f32.mrf.mxu0
        %v2491 = vadd.f32 0.0, %v2490
        %2492 = vdwg.mxu0
        %v2493 = vmul.f32 %v352, %v2471
        %v2494 = vmul.f32 %v353, %v2473
        %v2495 = vmul.f32 %v354, %v2477
        %v2496 = vmul.f32 %v355, %v2479
        %v2497 = vmul.f32 %v356, %v2483
        %v2498 = vmul.f32 %v357, %v2485
        %v2499 = vmul.f32 %v358, %v2489
        %v2500 = vmul.f32 %v359, %v2491
        %2501 = vst [vmem:[%s343] sm:$0xff] %v2493
        %2502 = vst [vmem:[%s343 + $0x8] sm:$0xff] %v2494
        %2503 = vst [vmem:[%s343 + $0x10] sm:$0xff] %v2495
        %2504 = vst [vmem:[%s343 + $0x18] sm:$0xff] %v2496
        %2505 = vst [vmem:[%s343 + $0x20] sm:$0xff] %v2497
        %2506 = vst [vmem:[%s343 + $0x28] sm:$0xff] %v2498
        %2507 = vst [vmem:[%s343 + $0x30] sm:$0xff] %v2499
        %2508 = vst [vmem:[%s343 + $0x38] sm:$0xff] %v2500
        %s2509 = sand.u32 %s226, 1
        %s2510 = scalar_lea.sflag [#allocation4], %s2509
        %s2511 = sand.u32 %s226, 1
        %s2512 = smul.addr %s2511, 64
        %s2513 = scalar_lea.vmem [#allocation5], %s2512
        // Predicated region
        $region61: #{tpu_custom_call.1} parent=55 // pred_check
          %p2514 = pneg %p236
        $region62: #{tpu_custom_call.1} parent=55 // pred_check_branch
          %2516 = sbr.rel (%p2514) target = $region64
        $region63: #{tpu_custom_call.1} parent=55 // pred_region
          %s2517 = smul.u32 4, %s24
          %s2519 = ssub.s32 1024, 1024
          %2520 = vsyncadd %s2510, %s2519
          %s2521 = smul.addr %s2517, 2
          %s2522 = smul.addr %s2521, 128
          %s2523 = scalar_lea.hbm %s9, %s2522
          %s2524 = sshll.u32 %s2513, 4
          %s2525 = int_to_ptr.vmem [resolvable:$true] %s2524
          %2530 = dma.vmem_to_hbm [thread:$0]  %s2525, 1024, %s2523, %s2510, 256, 256, 16
        $region64: #{tpu_custom_call.1} parent=55 // pred_fallthru
          _
      $region56: #{tpu_custom_call.1} parent=5 // pred_fallthru
        _
      %p2531 = scmp.le.s32.totalorder 2, %s19
      // Predicated region
      $region65: #{tpu_custom_call.1} parent=5 // pred_check
        %p2532 = pneg %p2531
      $region66: #{tpu_custom_call.1} parent=5 // pred_check_branch
        %2534 = sbr.rel (%p2532) target = $region68
      $region67: #{tpu_custom_call.1} parent=5 // pred_region
        %s2535 = ssub.s32 %s19, 2
        // Predicated region
        $region69: #{tpu_custom_call.1} parent=67 // pred_check
          %p2536 = pneg %p242
        $region70: #{tpu_custom_call.1} parent=67 // pred_check_branch
          %2538 = sbr.rel (%p2536) target = $region72
        $region71: #{tpu_custom_call.1} parent=67 // pred_region
          %s2539 = sand.u32 %s227, 1
          %s2540 = scalar_lea.sflag [#allocation4], %s2539
          %s2541 = sand.u32 %s227, 1
          %s2542 = smul.addr %s2541, 64
          %s2543 = scalar_lea.vmem [#allocation5], %s2542
          %2544 = dma.done %s2540, 1024
        $region72: #{tpu_custom_call.1} parent=67 // pred_fallthru
          _
      $region68: #{tpu_custom_call.1} parent=5 // pred_fallthru
        _
    $region6: #{tpu_custom_call.1} parent=1 // loop_footer
      %s23 = sadd.s32 1, %s19
    $region7: #{tpu_custom_call.1} parent=1 // loop_footer_branch
      %18 = sbr.rel target = $region3
    $region8: #{tpu_custom_call.1} parent=1 // loop_exit
      _
    %2545 = vsyncpa [#allocation3], 1
    %s2546 = scalar_lea.sflag [#allocation3], 1
    %2547 = vsyncpa %s2546, 1
    %2548 = vsyncpa [#allocation4], 1
    %s2549 = scalar_lea.sflag [#allocation4], 1
    %2550 = vsyncpa %s2549, 1

</llo_original>
